<compile_context>
chip_gen: v7x
topology: tpu7x:2x2x1
jax: 0.10.0
libtpu: 0.0.40
codegen_flags: <defaults>
</compile_context>

<pallas_src>
import functools

import jax
import jax.numpy as jnp
from jax.experimental import pallas as pl
from jax.experimental.pallas import tpu as pltpu


def _round_up(x, m):
    return -(-x // m) * m


# ---------------------------------------------------------------------------
# Pallas kernel 1: tiled  Y = relu(X @ W + b)   (used for the two convs)
# ---------------------------------------------------------------------------
def _matmul_bias_relu_kernel(x_ref, w_ref, b_ref, o_ref):
    y = jnp.dot(x_ref[...], w_ref[...], preferred_element_type=jnp.float32)
    y = jnp.maximum(y + b_ref[...], 0.0)          # epilogue in f32
    o_ref[...] = y.astype(o_ref.dtype)


def matmul_bias_relu(x, w, b):
    """x: (M,Kp) bf16, w: (Kp,N) bf16, b: (1,N) f32 -> (M,N) bf16.
    Tiled over M; grid axis is 'parallel' so v7x's two TensorCores split it."""
    M, K = x.shape
    K2, N = w.shape
    assert K == K2, (K, K2)
    tm = 128 if M % 128 == 0 else M
    grid = (M // tm,)
    return pl.pallas_call(
        _matmul_bias_relu_kernel,
        out_shape=jax.ShapeDtypeStruct((M, N), jnp.bfloat16),
        grid=grid,
        in_specs=[
            pl.BlockSpec((tm, K), lambda i: (i, 0)),
            pl.BlockSpec((K, N), lambda i: (0, 0)),
            pl.BlockSpec((1, N), lambda i: (0, 0)),
        ],
        out_specs=pl.BlockSpec((tm, N), lambda i: (i, 0)),
        compiler_params=pltpu.CompilerParams(
            dimension_semantics=("parallel",),
            vmem_limit_bytes=32 * 1024 * 1024),
    )(x, w, b)


# ---------------------------------------------------------------------------
# Pallas kernel 2: fused FC stack
#   h = relu(x @ fc_w + fc_b)
#   for i in range(n_layers): h = relu(h @ mlp_w[i] + mlp_b[i])
#   y = h @ out_w + out_b
# All weights are whole-array VMEM blocks; activations never leave VMEM.
# All widths are padded to a common lane-dense width Wp (multiple of 128).
# ---------------------------------------------------------------------------
def _fused_mlp_kernel(x_ref, fcw_ref, fcb_ref, mw_ref, mb_ref, ow_ref, ob_ref,
                      o_ref, *, n_layers):
    h = jnp.dot(x_ref[...], fcw_ref[...], preferred_element_type=jnp.float32)
    h = jnp.maximum(h + fcb_ref[...], 0.0)
    for i in range(n_layers):                       # static unroll
        h = jnp.dot(h.astype(jnp.bfloat16), mw_ref[i],
                    preferred_element_type=jnp.float32)
        h = jnp.maximum(h + mb_ref[i], 0.0)
    y = jnp.dot(h.astype(jnp.bfloat16), ow_ref[...],
                preferred_element_type=jnp.float32)
    o_ref[...] = (y + ob_ref[...]).astype(o_ref.dtype)


def fused_mlp_pallas(x, fc_w, fc_b, mlp_w, mlp_b, out_w, out_b, *, n_layers):
    Mp, K = x.shape
    Wp = fc_w.shape[1]
    kernel = functools.partial(_fused_mlp_kernel, n_layers=n_layers)
    return pl.pallas_call(
        kernel,
        out_shape=jax.ShapeDtypeStruct((Mp, Wp), jnp.float32),
        grid=(1,),
        in_specs=[
            pl.BlockSpec((Mp, K), lambda i: (0, 0)),
            pl.BlockSpec((K, Wp), lambda i: (0, 0)),
            pl.BlockSpec((1, Wp), lambda i: (0, 0)),
            pl.BlockSpec((n_layers, Wp, Wp), lambda i: (0, 0, 0)),
            pl.BlockSpec((n_layers, 1, Wp), lambda i: (0, 0, 0)),
            pl.BlockSpec((Wp, Wp), lambda i: (0, 0)),
            pl.BlockSpec((1, Wp), lambda i: (0, 0)),
        ],
        out_specs=pl.BlockSpec((Mp, Wp), lambda i: (0, 0)),
        compiler_params=pltpu.CompilerParams(
            dimension_semantics=("arbitrary",),
            vmem_limit_bytes=32 * 1024 * 1024),
    )(x, fc_w, fc_b, mlp_w, mlp_b, out_w, out_b)


# ---------------------------------------------------------------------------
# Conv2d (+ ReLU) via im2col (JAX glue) + Pallas matmul
# ---------------------------------------------------------------------------
def _im2col(x_nhwc, kh, kw, stride, padding):
    B, H, W, C = x_nhwc.shape
    xp = jnp.pad(x_nhwc, ((0, 0), (padding, padding), (padding, padding), (0, 0)))
    Ho = (H + 2 * padding - kh) // stride + 1
    Wo = (W + 2 * padding - kw) // stride + 1
    patches = []
    for i in range(kh):
        for j in range(kw):
            patches.append(
                xp[:, i:i + stride * Ho:stride, j:j + stride * Wo:stride, :])
    cols = jnp.stack(patches, axis=3)                    # (B,Ho,Wo,kh*kw,C)
    return cols.reshape(B * Ho * Wo, kh * kw * C), (B, Ho, Wo)


def conv2d_relu_pallas(x_nhwc, w_mat, b, *, kh, kw, stride, padding):
    """w_mat: (Kp, Cout) bf16 with rows K..Kp-1 zero (K = kh*kw*Cin).
    b: (1, Cout) f32."""
    cols, (B, Ho, Wo) = _im2col(x_nhwc, kh, kw, stride, padding)
    K = cols.shape[1]
    Kp = w_mat.shape[0]
    cols = jnp.pad(cols, ((0, 0), (0, Kp - K))).astype(jnp.bfloat16)
    M = cols.shape[0]
    Mp = _round_up(M, 8)
    if Mp != M:
        cols = jnp.pad(cols, ((0, Mp - M), (0, 0)))
    y = matmul_bias_relu(cols, w_mat, b)
    if Mp != M:
        y = y[:M]
    cout = w_mat.shape[1]
    return y.reshape(B, Ho, Wo, cout)


# ---------------------------------------------------------------------------
# Parameter init (PyTorch-style uniform(+-1/sqrt(fan_in))); all padding,
# bf16 casting and the NCHW->NHWC row permutation of fc_w happen HERE, once.
# ---------------------------------------------------------------------------
def _uniform(key, shape, fan_in):
    bound = 1.0 / (fan_in ** 0.5)
    return jax.random.uniform(key, shape, jnp.float32, -bound, bound)


def init_dqn_params(key, in_channels, in_size, conv_feats, hidden_dim,
                    out_dim, n_layers):
    H, W = in_size
    c1, c2, k = 16, 32, 3
    Hc, Wc = H // 2, W // 2
    flat = c2 * Hc * Wc
    Wp = _round_up(max(conv_feats, hidden_dim, out_dim), 128)   # lane-dense FC width
    keys = jax.random.split(key, 8 + 2 * n_layers)
    p = {}

    # conv1: Cin -> 16, 3x3, stride 1, pad 1
    K1 = in_channels * k * k
    K1p = _round_up(K1, 128)
    w1 = _uniform(keys[0], (k, k, in_channels, c1), K1).reshape(K1, c1)
    p["conv1_w"] = jnp.pad(w1, ((0, K1p - K1), (0, 0))).astype(jnp.bfloat16)
    p["conv1_b"] = _uniform(keys[1], (c1,), K1).reshape(1, c1).astype(jnp.float32)

    # conv2: 16 -> 32, 3x3, stride 2, pad 1
    K2 = c1 * k * k
    K2p = _round_up(K2, 128)
    w2 = _uniform(keys[2], (k, k, c1, c2), K2).reshape(K2, c2)
    p["conv2_w"] = jnp.pad(w2, ((0, K2p - K2), (0, 0))).astype(jnp.bfloat16)
    p["conv2_b"] = _uniform(keys[3], (c2,), K2).reshape(1, c2).astype(jnp.float32)

    # fc: flat -> conv_feats.  Weight is conceptually laid out for NCHW
    # (torch.flatten) order; permute its rows once to NHWC-flatten order so
    # the forward can skip the runtime transpose.
    fc_w_nchw = _uniform(keys[4], (flat, conv_feats), flat)
    yy = jnp.arange(Hc).reshape(Hc, 1, 1)
    xx = jnp.arange(Wc).reshape(1, Wc, 1)
    cc = jnp.arange(c2).reshape(1, 1, c2)
    perm = (cc * (Hc * Wc) + yy * Wc + xx).reshape(-1)   # NHWC pos -> NCHW idx
    fc_w = fc_w_nchw[perm]
    p["fc_w"] = jnp.pad(fc_w, ((0, 0), (0, Wp - conv_feats))).astype(jnp.bfloat16)
    fc_b = _uniform(keys[5], (conv_feats,), flat)
    p["fc_b"] = jnp.pad(fc_b, (0, Wp - conv_feats)).reshape(1, Wp).astype(jnp.float32)

    # MLP stack (stacked into one array so the fused kernel indexes layers)
    mlp_w, mlp_b = [], []
    in_dims = [conv_feats] + [hidden_dim] * (n_layers - 1)
    for i in range(n_layers):
        kin = in_dims[i]
        w = _uniform(keys[6 + 2 * i], (kin, hidden_dim), kin)
        b = _uniform(keys[7 + 2 * i], (hidden_dim,), kin)
        mlp_w.append(jnp.pad(w, ((0, Wp - kin), (0, Wp - hidden_dim))))
        mlp_b.append(jnp.pad(b, (0, Wp - hidden_dim)).reshape(1, Wp))
    p["mlp_w"] = jnp.stack(mlp_w).astype(jnp.bfloat16)      # (n_layers, Wp, Wp)
    p["mlp_b"] = jnp.stack(mlp_b).astype(jnp.float32)       # (n_layers, 1, Wp)

    # output head: hidden -> out_dim (cols beyond out_dim are zero)
    ow = _uniform(keys[-2], (hidden_dim, out_dim), hidden_dim)
    ob = _uniform(keys[-1], (out_dim,), hidden_dim)
    p["out_w"] = jnp.pad(ow, ((0, Wp - hidden_dim), (0, Wp - out_dim))).astype(jnp.bfloat16)
    p["out_b"] = jnp.pad(ob, (0, Wp - out_dim)).reshape(1, Wp).astype(jnp.float32)
    return p


# ---------------------------------------------------------------------------
# DQN forward:  logits = FeedForwardNN(ConvNet(x))
# ---------------------------------------------------------------------------
def dqn_forward(params, x_nchw, *, n_layers, out_dim):
    # NCHW (PyTorch) -> NHWC (kernel layout); cast to bf16 once at the boundary.
    x = jnp.transpose(x_nchw, (0, 2, 3, 1)).astype(jnp.bfloat16)

    # --- ConvNet ---
    h = conv2d_relu_pallas(x, params["conv1_w"], params["conv1_b"],
                           kh=3, kw=3, stride=1, padding=1)
    h = conv2d_relu_pallas(h, params["conv2_w"], params["conv2_b"],
                           kh=3, kw=3, stride=2, padding=1)
    B = h.shape[0]
    # NHWC flatten (fc_w rows were permuted at init; no runtime transpose).
    h = h.reshape(B, -1)

    # Pad batch/M to >= 8 sublanes for the fused FC kernel.
    Mp = _round_up(max(B, 8), 8)
    if Mp != B:
        h = jnp.pad(h, ((0, Mp - B), (0, 0)))

    # --- fc + FeedForwardNN (ReLU, Norm=None) + output head, fully fused ---
    logits_pad = fused_mlp_pallas(h, params["fc_w"], params["fc_b"],
                                  params["mlp_w"], params["mlp_b"],
                                  params["out_w"], params["out_b"],
                                  n_layers=n_layers)
    return logits_pad[:B, :out_dim]


# ---------------------------------------------------------------------------
# Pure-JAX reference (same bf16 casts / padded weights) for a sanity check.
# ---------------------------------------------------------------------------
def _reference_forward(params, x_nchw, *, n_layers, out_dim):
    x = jnp.transpose(x_nchw, (0, 2, 3, 1)).astype(jnp.bfloat16)

    def conv_ref(x, w_mat, b, stride, padding):
        cols, (B, Ho, Wo) = _im2col(x, 3, 3, stride, padding)
        K = cols.shape[1]
        Kp = w_mat.shape[0]
        cols = jnp.pad(cols, ((0, 0), (0, Kp - K))).astype(jnp.bfloat16)
        y = jnp.dot(cols, w_mat, preferred_element_type=jnp.float32) + b
        y = jnp.maximum(y, 0.0).astype(jnp.bfloat16)
        return y.reshape(B, Ho, Wo, -1)

    h = conv_ref(x, params["conv1_w"], params["conv1_b"], 1, 1)
    h = conv_ref(h, params["conv2_w"], params["conv2_b"], 2, 1)
    B = h.shape[0]
    h = h.reshape(B, -1)
    a = jnp.dot(h, params["fc_w"], preferred_element_type=jnp.float32) + params["fc_b"]
    a = jnp.maximum(a, 0.0)
    for i in range(n_layers):
        a = jnp.dot(a.astype(jnp.bfloat16), params["mlp_w"][i],
                    preferred_element_type=jnp.float32) + params["mlp_b"][i]
        a = jnp.maximum(a, 0.0)
    y = jnp.dot(a.astype(jnp.bfloat16), params["out_w"],
                preferred_element_type=jnp.float32) + params["out_b"]
    return y[:, :out_dim]


# ---------------------------------------------------------------------------
if __name__ == "__main__":
    # Small, module-consistent shapes.
    B, C_in, H, W = 2, 4, 16, 16
    in_size = (H, W)
    conv_feats, hidden_dim, out_dim, n_layers = 32, 32, 8, 2

    key = jax.random.PRNGKey(0)
    k_param, k_x = jax.random.split(key)
    params = init_dqn_params(k_param, C_in, in_size, conv_feats,
                             hidden_dim, out_dim, n_layers)
    x = jax.random.normal(k_x, (B, C_in, H, W), jnp.float32)   # NCHW input

    fwd = jax.jit(functools.partial(dqn_forward, n_layers=n_layers,
                                    out_dim=out_dim))
    logits = fwd(params, x)
    jax.block_until_ready(logits)
    assert logits.shape == (B, out_dim), logits.shape
    assert logits.dtype == jnp.float32

    ref = _reference_forward(params, x, n_layers=n_layers, out_dim=out_dim)
    jax.block_until_ready(ref)
    assert jnp.allclose(logits, ref, rtol=5e-2, atol=5e-2), (
        float(jnp.max(jnp.abs(logits - ref))))

    print("KERNEL_OK")
</pallas_src>

<mosaic_0001>
module attributes {stable_mosaic.version = 11 : i64} {
  func.func @_matmul_bias_relu_kernel(%arg0: i32, %arg1: memref<128x128xbf16, #tpu.memory_space<vmem>>, %arg2: memref<128x16xbf16, #tpu.memory_space<vmem>>, %arg3: memref<1x16xf32, #tpu.memory_space<vmem>>, %arg4: memref<128x16xbf16, #tpu.memory_space<vmem>>) attributes {dimension_semantics = [#tpu.dimension_semantics<parallel>], iteration_bounds = array<i64: 4>, scalar_prefetch = 0 : i64, scratch_operands = 0 : i64, tpu.core_type = #tpu.core_type<tc>, window_params = [{transform_indices = @transform_0, window_bounds = array<i64: 128, 128>}, {pipeline_mode = #tpu.pipeline_mode<synchronous>, transform_indices = @transform_1, window_bounds = array<i64: 128, 16>}, {pipeline_mode = #tpu.pipeline_mode<synchronous>, transform_indices = @transform_2, window_bounds = array<i64: 1, 16>}, {transform_indices = @transform_3, window_bounds = array<i64: 128, 16>}]} {
    %c0 = arith.constant 0 : index
    %c0_0 = arith.constant 0 : index
    %0 = vector.load %arg1[%c0, %c0_0] : memref<128x128xbf16, #tpu.memory_space<vmem>>, vector<128x128xbf16>
    %c0_1 = arith.constant 0 : index
    %c0_2 = arith.constant 0 : index
    %1 = vector.load %arg2[%c0_1, %c0_2] : memref<128x16xbf16, #tpu.memory_space<vmem>>, vector<128x16xbf16>
    %cst = arith.constant dense<0.000000e+00> : vector<128x16xf32>
    %2 = tpu.matmul %0, %1, %cst {dimension_numbers = #tpu.dot_dimension_numbers<[1], [0], [0], [1], [0, 0, 1, 1], [], []>} : vector<128x128xbf16>, vector<128x16xbf16>, vector<128x16xf32> -> vector<128x16xf32>
    %c0_3 = arith.constant 0 : index
    %c0_4 = arith.constant 0 : index
    %3 = vector.load %arg3[%c0_3, %c0_4] : memref<1x16xf32, #tpu.memory_space<vmem>>, vector<1x16xf32>
    %4 = vector.broadcast %3 : vector<1x16xf32> to vector<128x16xf32>
    %5 = arith.addf %2, %4 : vector<128x16xf32>
    %cst_5 = arith.constant 0.000000e+00 : f32
    %6 = vector.broadcast %cst_5 : f32 to vector<128x16xf32>
    %7 = arith.maximumf %5, %6 : vector<128x16xf32>
    %8 = arith.truncf %7 : vector<128x16xf32> to vector<128x16xbf16>
    %c0_6 = arith.constant 0 : index
    %c0_7 = arith.constant 0 : index
    %9 = vector.load %arg4[%c0_6, %c0_7] : memref<128x16xbf16, #tpu.memory_space<vmem>>, vector<128x16xbf16>
    tpu.vector_store %arg4[%c0_6, %c0_7], %8 {strides = array<i32>} : memref<128x16xbf16, #tpu.memory_space<vmem>>, vector<128x16xbf16>,
    return
  }
  func.func @transform_0(%arg0: i32) -> (i32, i32) {
    %c0_i32 = arith.constant 0 : i32
    %c0_i32_0 = arith.constant 0 : i32
    return %arg0, %c0_i32 : i32, i32
  }
  func.func @transform_1(%arg0: i32) -> (i32, i32) {
    %c0_i32 = arith.constant 0 : i32
    %c0_i32_0 = arith.constant 0 : i32
    %c0_i32_1 = arith.constant 0 : i32
    return %c0_i32, %c0_i32_0 : i32, i32
  }
  func.func @transform_2(%arg0: i32) -> (i32, i32) {
    %c0_i32 = arith.constant 0 : i32
    %c0_i32_0 = arith.constant 0 : i32
    %c0_i32_1 = arith.constant 0 : i32
    return %c0_i32, %c0_i32_0 : i32, i32
  }
  func.func @transform_3(%arg0: i32) -> (i32, i32) {
    %c0_i32 = arith.constant 0 : i32
    %c0_i32_0 = arith.constant 0 : i32
    return %arg0, %c0_i32 : i32, i32
  }
}

module attributes {stable_mosaic.version = 11 : i64} {
  func.func @_matmul_bias_relu_kernel(%arg0: i32, %arg1: memref<128x256xbf16, #tpu.memory_space<vmem>>, %arg2: memref<256x32xbf16, #tpu.memory_space<vmem>>, %arg3: memref<1x32xf32, #tpu.memory_space<vmem>>, %arg4: memref<128x32xbf16, #tpu.memory_space<vmem>>) attributes {dimension_semantics = [#tpu.dimension_semantics<parallel>], iteration_bounds = array<i64: 1>, scalar_prefetch = 0 : i64, scratch_operands = 0 : i64, tpu.core_type = #tpu.core_type<tc>, window_params = [{transform_indices = @transform_0, window_bounds = array<i64: 128, 256>}, {pipeline_mode = #tpu.pipeline_mode<synchronous>, transform_indices = @transform_1, window_bounds = array<i64: 256, 32>}, {pipeline_mode = #tpu.pipeline_mode<synchronous>, transform_indices = @transform_2, window_bounds = array<i64: 1, 32>}, {transform_indices = @transform_3, window_bounds = array<i64: 128, 32>}]} {
    %c0 = arith.constant 0 : index
    %c0_0 = arith.constant 0 : index
    %0 = vector.load %arg1[%c0, %c0_0] : memref<128x256xbf16, #tpu.memory_space<vmem>>, vector<128x256xbf16>
    %c0_1 = arith.constant 0 : index
    %c0_2 = arith.constant 0 : index
    %1 = vector.load %arg2[%c0_1, %c0_2] : memref<256x32xbf16, #tpu.memory_space<vmem>>, vector<256x32xbf16>
    %cst = arith.constant dense<0.000000e+00> : vector<128x32xf32>
    %2 = tpu.matmul %0, %1, %cst {dimension_numbers = #tpu.dot_dimension_numbers<[1], [0], [0], [1], [0, 0, 1, 1], [], []>} : vector<128x256xbf16>, vector<256x32xbf16>, vector<128x32xf32> -> vector<128x32xf32>
    %c0_3 = arith.constant 0 : index
    %c0_4 = arith.constant 0 : index
    %3 = vector.load %arg3[%c0_3, %c0_4] : memref<1x32xf32, #tpu.memory_space<vmem>>, vector<1x32xf32>
    %4 = vector.broadcast %3 : vector<1x32xf32> to vector<128x32xf32>
    %5 = arith.addf %2, %4 : vector<128x32xf32>
    %cst_5 = arith.constant 0.000000e+00 : f32
    %6 = vector.broadcast %cst_5 : f32 to vector<128x32xf32>
    %7 = arith.maximumf %5, %6 : vector<128x32xf32>
    %8 = arith.truncf %7 : vector<128x32xf32> to vector<128x32xbf16>
    %c0_6 = arith.constant 0 : index
    %c0_7 = arith.constant 0 : index
    %9 = vector.load %arg4[%c0_6, %c0_7] : memref<128x32xbf16, #tpu.memory_space<vmem>>, vector<128x32xbf16>
    tpu.vector_store %arg4[%c0_6, %c0_7], %8 {strides = array<i32>} : memref<128x32xbf16, #tpu.memory_space<vmem>>, vector<128x32xbf16>,
    return
  }
  func.func @transform_0(%arg0: i32) -> (i32, i32) {
    %c0_i32 = arith.constant 0 : i32
    %c0_i32_0 = arith.constant 0 : i32
    return %arg0, %c0_i32 : i32, i32
  }
  func.func @transform_1(%arg0: i32) -> (i32, i32) {
    %c0_i32 = arith.constant 0 : i32
    %c0_i32_0 = arith.constant 0 : i32
    %c0_i32_1 = arith.constant 0 : i32
    return %c0_i32, %c0_i32_0 : i32, i32
  }
  func.func @transform_2(%arg0: i32) -> (i32, i32) {
    %c0_i32 = arith.constant 0 : i32
    %c0_i32_0 = arith.constant 0 : i32
    %c0_i32_1 = arith.constant 0 : i32
    return %c0_i32, %c0_i32_0 : i32, i32
  }
  func.func @transform_3(%arg0: i32) -> (i32, i32) {
    %c0_i32 = arith.constant 0 : i32
    %c0_i32_0 = arith.constant 0 : i32
    return %arg0, %c0_i32 : i32, i32
  }
}

module attributes {stable_mosaic.version = 11 : i64} {
  func.func @_fused_mlp_kernel(%arg0: i32, %arg1: memref<8x2048xbf16, #tpu.memory_space<vmem>>, %arg2: memref<2048x128xbf16, #tpu.memory_space<vmem>>, %arg3: memref<1x128xf32, #tpu.memory_space<vmem>>, %arg4: memref<2x128x128xbf16, #tpu.memory_space<vmem>>, %arg5: memref<2x1x128xf32, #tpu.memory_space<vmem>>, %arg6: memref<128x128xbf16, #tpu.memory_space<vmem>>, %arg7: memref<1x128xf32, #tpu.memory_space<vmem>>, %arg8: memref<8x128xf32, #tpu.memory_space<vmem>>) attributes {dimension_semantics = [#tpu.dimension_semantics<arbitrary>], iteration_bounds = array<i64: 1>, scalar_prefetch = 0 : i64, scratch_operands = 0 : i64, tpu.core_type = #tpu.core_type<tc>, window_params = [{pipeline_mode = #tpu.pipeline_mode<synchronous>, transform_indices = @transform_0, window_bounds = array<i64: 8, 2048>}, {pipeline_mode = #tpu.pipeline_mode<synchronous>, transform_indices = @transform_1, window_bounds = array<i64: 2048, 128>}, {pipeline_mode = #tpu.pipeline_mode<synchronous>, transform_indices = @transform_2, window_bounds = array<i64: 1, 128>}, {pipeline_mode = #tpu.pipeline_mode<synchronous>, transform_indices = @transform_3, window_bounds = array<i64: 2, 128, 128>}, {pipeline_mode = #tpu.pipeline_mode<synchronous>, transform_indices = @transform_4, window_bounds = array<i64: 2, 1, 128>}, {pipeline_mode = #tpu.pipeline_mode<synchronous>, transform_indices = @transform_5, window_bounds = array<i64: 128, 128>}, {pipeline_mode = #tpu.pipeline_mode<synchronous>, transform_indices = @transform_6, window_bounds = array<i64: 1, 128>}, {pipeline_mode = #tpu.pipeline_mode<synchronous>, transform_indices = @transform_7, window_bounds = array<i64: 8, 128>}]} {
    %c0 = arith.constant 0 : index
    %c0_0 = arith.constant 0 : index
    %0 = vector.load %arg1[%c0, %c0_0] : memref<8x2048xbf16, #tpu.memory_space<vmem>>, vector<8x2048xbf16>
    %c0_1 = arith.constant 0 : index
    %c0_2 = arith.constant 0 : index
    %1 = vector.load %arg2[%c0_1, %c0_2] : memref<2048x128xbf16, #tpu.memory_space<vmem>>, vector<2048x128xbf16>
    %cst = arith.constant dense<0.000000e+00> : vector<8x128xf32>
    %2 = tpu.matmul %0, %1, %cst {dimension_numbers = #tpu.dot_dimension_numbers<[1], [0], [0], [1], [0, 0, 1, 1], [], []>} : vector<8x2048xbf16>, vector<2048x128xbf16>, vector<8x128xf32> -> vector<8x128xf32>
    %c0_3 = arith.constant 0 : index
    %c0_4 = arith.constant 0 : index
    %3 = vector.load %arg3[%c0_3, %c0_4] : memref<1x128xf32, #tpu.memory_space<vmem>>, vector<1x128xf32>
    %4 = vector.broadcast %3 : vector<1x128xf32> to vector<8x128xf32>
    %5 = arith.addf %2, %4 : vector<8x128xf32>
    %cst_5 = arith.constant 0.000000e+00 : f32
    %6 = vector.broadcast %cst_5 : f32 to vector<8x128xf32>
    %7 = arith.maximumf %5, %6 : vector<8x128xf32>
    %8 = arith.truncf %7 : vector<8x128xf32> to vector<8x128xbf16>
    %c0_6 = arith.constant 0 : index
    %c0_7 = arith.constant 0 : index
    %c0_8 = arith.constant 0 : index
    %9 = vector.load %arg4[%c0_6, %c0_7, %c0_8] : memref<2x128x128xbf16, #tpu.memory_space<vmem>>, vector<1x128x128xbf16>
    %10 = vector.shape_cast %9 : vector<1x128x128xbf16> to vector<128x128xbf16>
    %cst_9 = arith.constant dense<0.000000e+00> : vector<8x128xf32>
    %11 = tpu.matmul %8, %10, %cst_9 {dimension_numbers = #tpu.dot_dimension_numbers<[1], [0], [0], [1], [0, 0, 1, 1], [], []>} : vector<8x128xbf16>, vector<128x128xbf16>, vector<8x128xf32> -> vector<8x128xf32>
    %c0_10 = arith.constant 0 : index
    %c0_11 = arith.constant 0 : index
    %c0_12 = arith.constant 0 : index
    %12 = vector.load %arg5[%c0_10, %c0_11, %c0_12] : memref<2x1x128xf32, #tpu.memory_space<vmem>>, vector<1x1x128xf32>
    %13 = vector.shape_cast %12 : vector<1x1x128xf32> to vector<1x128xf32>
    %14 = vector.broadcast %13 : vector<1x128xf32> to vector<8x128xf32>
    %15 = arith.addf %11, %14 : vector<8x128xf32>
    %cst_13 = arith.constant 0.000000e+00 : f32
    %16 = vector.broadcast %cst_13 : f32 to vector<8x128xf32>
    %17 = arith.maximumf %15, %16 : vector<8x128xf32>
    %18 = arith.truncf %17 : vector<8x128xf32> to vector<8x128xbf16>
    %c1 = arith.constant 1 : index
    %c0_14 = arith.constant 0 : index
    %c0_15 = arith.constant 0 : index
    %19 = vector.load %arg4[%c1, %c0_14, %c0_15] : memref<2x128x128xbf16, #tpu.memory_space<vmem>>, vector<1x128x128xbf16>
    %20 = vector.shape_cast %19 : vector<1x128x128xbf16> to vector<128x128xbf16>
    %cst_16 = arith.constant dense<0.000000e+00> : vector<8x128xf32>
    %21 = tpu.matmul %18, %20, %cst_16 {dimension_numbers = #tpu.dot_dimension_numbers<[1], [0], [0], [1], [0, 0, 1, 1], [], []>} : vector<8x128xbf16>, vector<128x128xbf16>, vector<8x128xf32> -> vector<8x128xf32>
    %c1_17 = arith.constant 1 : index
    %c0_18 = arith.constant 0 : index
    %c0_19 = arith.constant 0 : index
    %22 = vector.load %arg5[%c1_17, %c0_18, %c0_19] : memref<2x1x128xf32, #tpu.memory_space<vmem>>, vector<1x1x128xf32>
    %23 = vector.shape_cast %22 : vector<1x1x128xf32> to vector<1x128xf32>
    %24 = vector.broadcast %23 : vector<1x128xf32> to vector<8x128xf32>
    %25 = arith.addf %21, %24 : vector<8x128xf32>
    %cst_20 = arith.constant 0.000000e+00 : f32
    %26 = vector.broadcast %cst_20 : f32 to vector<8x128xf32>
    %27 = arith.maximumf %25, %26 : vector<8x128xf32>
    %28 = arith.truncf %27 : vector<8x128xf32> to vector<8x128xbf16>
    %c0_21 = arith.constant 0 : index
    %c0_22 = arith.constant 0 : index
    %29 = vector.load %arg6[%c0_21, %c0_22] : memref<128x128xbf16, #tpu.memory_space<vmem>>, vector<128x128xbf16>
    %cst_23 = arith.constant dense<0.000000e+00> : vector<8x128xf32>
    %30 = tpu.matmul %28, %29, %cst_23 {dimension_numbers = #tpu.dot_dimension_numbers<[1], [0], [0], [1], [0, 0, 1, 1], [], []>} : vector<8x128xbf16>, vector<128x128xbf16>, vector<8x128xf32> -> vector<8x128xf32>
    %c0_24 = arith.constant 0 : index
    %c0_25 = arith.constant 0 : index
    %31 = vector.load %arg7[%c0_24, %c0_25] : memref<1x128xf32, #tpu.memory_space<vmem>>, vector<1x128xf32>
    %32 = vector.broadcast %31 : vector<1x128xf32> to vector<8x128xf32>
    %33 = arith.addf %30, %32 : vector<8x128xf32>
    %c0_26 = arith.constant 0 : index
    %c0_27 = arith.constant 0 : index
    %34 = vector.load %arg8[%c0_26, %c0_27] : memref<8x128xf32, #tpu.memory_space<vmem>>, vector<8x128xf32>
    tpu.vector_store %arg8[%c0_26, %c0_27], %33 {strides = array<i32>} : memref<8x128xf32, #tpu.memory_space<vmem>>, vector<8x128xf32>,
    return
  }
  func.func @transform_0(%arg0: i32) -> (i32, i32) {
    %c0_i32 = arith.constant 0 : i32
    %c0_i32_0 = arith.constant 0 : i32
    %c0_i32_1 = arith.constant 0 : i32
    return %c0_i32, %c0_i32_0 : i32, i32
  }
  func.func @transform_1(%arg0: i32) -> (i32, i32) {
    %c0_i32 = arith.constant 0 : i32
    %c0_i32_0 = arith.constant 0 : i32
    %c0_i32_1 = arith.constant 0 : i32
    return %c0_i32, %c0_i32_0 : i32, i32
  }
  func.func @transform_2(%arg0: i32) -> (i32, i32) {
    %c0_i32 = arith.constant 0 : i32
    %c0_i32_0 = arith.constant 0 : i32
    %c0_i32_1 = arith.constant 0 : i32
    return %c0_i32, %c0_i32_0 : i32, i32
  }
  func.func @transform_3(%arg0: i32) -> (i32, i32, i32) {
    %c0_i32 = arith.constant 0 : i32
    %c0_i32_0 = arith.constant 0 : i32
    %c0_i32_1 = arith.constant 0 : i32
    %c0_i32_2 = arith.constant 0 : i32
    return %c0_i32, %c0_i32_0, %c0_i32_1 : i32, i32, i32
  }
  func.func @transform_4(%arg0: i32) -> (i32, i32, i32) {
    %c0_i32 = arith.constant 0 : i32
    %c0_i32_0 = arith.constant 0 : i32
    %c0_i32_1 = arith.constant 0 : i32
    %c0_i32_2 = arith.constant 0 : i32
    return %c0_i32, %c0_i32_0, %c0_i32_1 : i32, i32, i32
  }
  func.func @transform_5(%arg0: i32) -> (i32, i32) {
    %c0_i32 = arith.constant 0 : i32
    %c0_i32_0 = arith.constant 0 : i32
    %c0_i32_1 = arith.constant 0 : i32
    return %c0_i32, %c0_i32_0 : i32, i32
  }
  func.func @transform_6(%arg0: i32) -> (i32, i32) {
    %c0_i32 = arith.constant 0 : i32
    %c0_i32_0 = arith.constant 0 : i32
    %c0_i32_1 = arith.constant 0 : i32
    return %c0_i32, %c0_i32_0 : i32, i32
  }
  func.func @transform_7(%arg0: i32) -> (i32, i32) {
    %c0_i32 = arith.constant 0 : i32
    %c0_i32_0 = arith.constant 0 : i32
    %c0_i32_1 = arith.constant 0 : i32
    return %c0_i32, %c0_i32_0 : i32, i32
  }
}

</mosaic_0001>

<llo_original>
// kernel: dqn_forward.3
$region0: #{dqn_forward.3}
  #allocation0 [shape = 'u32[]', space=smem, size = 0x4, offset = 0x4, fixed_abs, tag = 'smem constant byte address 0x4 - core index']
  #allocation1 [shape = 'u32[144,128]{1,0:T(1,128)}', space=vmem, size = 0x12000, scoped, tag = 'internal scratch']
  %s0 = inlined_call_operand.vmem [shape: bf16[512,128], index: 0, kind: input, shape index: {}]
  %s1 = inlined_call_operand.vmem [shape: bf16[128,16], index: 1, kind: input, shape index: {}]
  %s2 = inlined_call_operand.vmem [shape: f32[1,16], index: 2, kind: input, shape index: {}]
  %s3 = inlined_call_operand.vmem [shape: bf16[512,16], index: 3, kind: output, shape index: {}]
  %s4 = sld [smem:[#allocation0]]
  $region45: #{dqn_forward.3} parent=0
    _
  %s6 = ssub.s32 1, %s4
  %s7 = scalar_select 0, %s6, %s4
  loop: start=0, step=1, limit=6
  $region2: #{dqn_forward.3} parent=0 // loop_pre_header
    _
  $region3: #{dqn_forward.3} parent=0 // loop_header
    %s9 = sphi 0, %s13
    %p10 = scmp.ge.s32.totalorder %s9, 6
    %s19 = sphi 0, %s21
    %s22 = sphi 0, %s19
    %s23 = sphi 0, %s22
    %s39 = sphi 0, %s23
    %s43 = sphi 0, %s43
    %s45 = sphi 0, %s43
    %s46 = sphi 0, %s45
    %s60 = sphi 0, %s46
    %s64 = sphi 0, %s64
    %s66 = sphi 0, %s64
    %s67 = sphi 0, %s66
    %s81 = sphi 0, %s67
    %s87 = sphi 0, %s89
    %s90 = sphi 0, %s87
    %s91 = sphi 0, %s90
    %s107 = sphi 0, %s91
  $region4: #{dqn_forward.3} parent=0 // loop_header_branch
    %12 = sbr.rel (%p10) target = $region8
  $region5: #{dqn_forward.3} parent=0 // loop_body
    %s14 = ssub.s32 %s9, 1
    %s15 = ssub.s32 %s9, 2
    %s16 = sadd.s32 %s9, 1
    %s17 = ssub.s32 %s9, %s16
    %p18 = scmp.eq.s32.totalorder %s17, 0
    %s20 = sadd.s32 %s19, 1
    %s21 = scalar_select %p18, %s19, %s20
    %p24 = pneg %p18
    %p25 = scmp.eq.s32.totalorder %s9, 3
    %p26 = por %p24, %p25
    %p27 = scmp.ne.s32.totalorder %s19, %s22
    %p28 = scmp.eq.s32.totalorder %s9, 0
    %p29 = por %p27, %p28
    %p30 = scmp.ne.s32.totalorder %s19, %s22
    %p31 = scmp.eq.s32.totalorder %s14, 3
    %p32 = por %p30, %p31
    %p33 = scmp.ne.s32.totalorder %s22, %s23
    %p34 = scmp.eq.s32.totalorder %s14, 0
    %p35 = por %p33, %p34
    %p36 = scmp.ne.s32.totalorder %s22, %s23
    %p37 = scmp.eq.s32.totalorder %s15, 3
    %p38 = por %p36, %p37
    %p40 = scmp.ne.s32.totalorder %s23, %s39
    %p41 = scmp.eq.s32.totalorder %s15, 0
    %p42 = por %p40, %p41
    %s44 = sadd.s32 %s43, 1
    %p47 = scmp.eq.s32.totalorder %s9, 3
    %p48 = scmp.ne.s32.totalorder %s43, %s45
    %p49 = scmp.eq.s32.totalorder %s9, 0
    %p50 = por %p48, %p49
    %p51 = scmp.ne.s32.totalorder %s43, %s45
    %p52 = scmp.eq.s32.totalorder %s14, 3
    %p53 = por %p51, %p52
    %p54 = scmp.ne.s32.totalorder %s45, %s46
    %p55 = scmp.eq.s32.totalorder %s14, 0
    %p56 = por %p54, %p55
    %p57 = scmp.ne.s32.totalorder %s45, %s46
    %p58 = scmp.eq.s32.totalorder %s15, 3
    %p59 = por %p57, %p58
    %p61 = scmp.ne.s32.totalorder %s46, %s60
    %p62 = scmp.eq.s32.totalorder %s15, 0
    %p63 = por %p61, %p62
    %s65 = sadd.s32 %s64, 1
    %p68 = scmp.eq.s32.totalorder %s9, 3
    %p69 = scmp.ne.s32.totalorder %s64, %s66
    %p70 = scmp.eq.s32.totalorder %s9, 0
    %p71 = por %p69, %p70
    %p72 = scmp.ne.s32.totalorder %s64, %s66
    %p73 = scmp.eq.s32.totalorder %s14, 3
    %p74 = por %p72, %p73
    %p75 = scmp.ne.s32.totalorder %s66, %s67
    %p76 = scmp.eq.s32.totalorder %s14, 0
    %p77 = por %p75, %p76
    %p78 = scmp.ne.s32.totalorder %s66, %s67
    %p79 = scmp.eq.s32.totalorder %s15, 3
    %p80 = por %p78, %p79
    %p82 = scmp.ne.s32.totalorder %s67, %s81
    %p83 = scmp.eq.s32.totalorder %s15, 0
    %p84 = por %p82, %p83
    %s85 = ssub.s32 %s9, %s16
    %p86 = scmp.eq.s32.totalorder %s85, 0
    %s88 = sadd.s32 %s87, 1
    %s89 = scalar_select %p86, %s87, %s88
    %p92 = pneg %p86
    %p93 = scmp.eq.s32.totalorder %s9, 3
    %p94 = por %p92, %p93
    %p95 = scmp.ne.s32.totalorder %s87, %s90
    %p96 = scmp.eq.s32.totalorder %s9, 0
    %p97 = por %p95, %p96
    %p98 = scmp.ne.s32.totalorder %s87, %s90
    %p99 = scmp.eq.s32.totalorder %s14, 3
    %p100 = por %p98, %p99
    %p101 = scmp.ne.s32.totalorder %s90, %s91
    %p102 = scmp.eq.s32.totalorder %s14, 0
    %p103 = por %p101, %p102
    %p104 = scmp.ne.s32.totalorder %s90, %s91
    %p105 = scmp.eq.s32.totalorder %s15, 3
    %p106 = por %p104, %p105
    %p108 = scmp.ne.s32.totalorder %s91, %s107
    %p109 = scmp.eq.s32.totalorder %s15, 0
    %p110 = por %p108, %p109
    %p111 = scmp.le.s32.totalorder 1, %s9
    %p112 = scmp.lt.s32.totalorder %s9, 5
    %p113 = pnand %p111, %p112
    %p114 = pneg %p113
    // Predicated region
    $region9: #{dqn_forward.3} parent=5 // pred_check
      _
    $region10: #{dqn_forward.3} parent=5 // pred_check_branch
      %116 = sbr.rel (%p113) target = $region12
    $region11: #{dqn_forward.3} parent=5 // pred_region
      %s117 = ssub.s32 %s9, 1
      // Predicated region
      $region13: #{dqn_forward.3} parent=11 // pred_check
        %p118 = pneg %p56
      $region14: #{dqn_forward.3} parent=11 // pred_check_branch
        %120 = sbr.rel (%p118) target = $region16
      $region15: #{dqn_forward.3} parent=11 // pred_region
        _
      $region16: #{dqn_forward.3} parent=11 // pred_fallthru
        _
      // Predicated region
      $region17: #{dqn_forward.3} parent=11 // pred_check
        %p121 = pneg %p77
      $region18: #{dqn_forward.3} parent=11 // pred_check_branch
        %123 = sbr.rel (%p121) target = $region20
      $region19: #{dqn_forward.3} parent=11 // pred_region
        _
      $region20: #{dqn_forward.3} parent=11 // pred_fallthru
        _
    $region12: #{dqn_forward.3} parent=5 // pred_fallthru
      _
    %p124 = scmp.lt.s32.totalorder %s9, 4
    // Predicated region
    $region21: #{dqn_forward.3} parent=5 // pred_check
      %p125 = pneg %p124
    $region22: #{dqn_forward.3} parent=5 // pred_check_branch
      %127 = sbr.rel (%p125) target = $region24
    $region23: #{dqn_forward.3} parent=5 // pred_region
      // Predicated region
      $region25: #{dqn_forward.3} parent=23 // pred_check
        %p128 = pneg %p29
      $region26: #{dqn_forward.3} parent=23 // pred_check_branch
        %130 = sbr.rel (%p128) target = $region28
      $region27: #{dqn_forward.3} parent=23 // pred_region
        %s131 = smul.u32 16, %s9
        %p132 = scmp.lt.s32.totalorder %s131, 63
        %s133 = scalar_select %p132, %s131, 63
        %s134 = smul.addr %s133, 4
        %s135 = scalar_lea.vmem %s0, %s134
        %s136 = smul.u32 16, %s9
      $region28: #{dqn_forward.3} parent=23 // pred_fallthru
        _
    $region24: #{dqn_forward.3} parent=5 // pred_fallthru
      _
    %p137 = scmp.le.s32.totalorder 1, %s9
    %p138 = scmp.lt.s32.totalorder %s9, 5
    %p139 = pnand %p137, %p138
    %p140 = pneg %p139
    // Predicated region
    $region29: #{dqn_forward.3} parent=5 // pred_check
      _
    $region30: #{dqn_forward.3} parent=5 // pred_check_branch
      %142 = sbr.rel (%p139) target = $region32
    $region31: #{dqn_forward.3} parent=5 // pred_region
      %s143 = ssub.s32 %s9, 1
      %s144 = smul.u32 16, %s14
      %p145 = scmp.lt.s32.totalorder %s144, 63
      %s146 = scalar_select %p145, %s144, 63
      %s147 = smul.addr %s146, 4
      %s148 = scalar_lea.vmem %s0, %s147
      %p149 = pneg %p35
      %p150 = pneg %p32
      %p151 = pneg %p56
      %p152 = pneg %p53
      %p153 = pneg %p77
      %p154 = pneg %p74
      %p155 = pneg %p103
      %p156 = pneg %p100
      %s157 = smul.u32 16, %s14
      %p158 = scmp.lt.s32.totalorder %s157, 63
      %s159 = scalar_select %p158, %s157, 63
      %s160 = smul.addr %s159, 4
      %s161 = scalar_lea.vmem %s3, %s160
      %s162 = smul.u32 16, %s14
      %p163 = scmp.lt.s32.totalorder %s162, 63
      %s164 = scalar_select %p163, %s162, 63
      %s165 = smul.addr %s164, 4
      %s166 = scalar_lea.vmem %s0, %s165
      %s167 = smul.u32 16, %s14
      %s168 = smul.u32 16, %s14
      %p169 = scmp.lt.s32.totalorder %s168, 63
      %s170 = scalar_select %p169, %s168, 63
      %s171 = smul.addr %s170, 4
      %s172 = scalar_lea.vmem %s3, %s171
      %s173 = smul.u32 16, %s14
      %v175 = vld [vmem:[%s166] sm:$0xf]
      %v176 = vld [vmem:[%s166 + $0x4] sm:$0xf]
      %v177 = vld [vmem:[%s166 + $0x8] sm:$0xf]
      %v178 = vld [vmem:[%s166 + $0xc] sm:$0xf]
      %v179 = vld [vmem:[%s166 + $0x10] sm:$0xf]
      %v180 = vld [vmem:[%s166 + $0x14] sm:$0xf]
      %v181 = vld [vmem:[%s166 + $0x18] sm:$0xf]
      %v182 = vld [vmem:[%s166 + $0x1c] sm:$0xf]
      %v183 = vld [vmem:[%s166 + $0x20] sm:$0xf]
      %v184 = vld [vmem:[%s166 + $0x24] sm:$0xf]
      %v185 = vld [vmem:[%s166 + $0x28] sm:$0xf]
      %v186 = vld [vmem:[%s166 + $0x2c] sm:$0xf]
      %v187 = vld [vmem:[%s166 + $0x30] sm:$0xf]
      %v188 = vld [vmem:[%s166 + $0x34] sm:$0xf]
      %v189 = vld [vmem:[%s166 + $0x38] sm:$0xf]
      %v190 = vld [vmem:[%s166 + $0x3c] sm:$0xf]
      %v191 = vld [vmem:[%s1] sm:$0xf]
      %v192 = vld [vmem:[%s1 + $0x4] sm:$0xf]
      %v193 = vld [vmem:[%s1 + $0x8] sm:$0xf]
      %v194 = vld [vmem:[%s1 + $0xc] sm:$0xf]
      %v195 = vld [vmem:[%s1 + $0x10] sm:$0xf]
      %v196 = vld [vmem:[%s1 + $0x14] sm:$0xf]
      %v197 = vld [vmem:[%s1 + $0x18] sm:$0xf]
      %v198 = vld [vmem:[%s1 + $0x1c] sm:$0xf]
      %v199 = vld [vmem:[%s1 + $0x20] sm:$0xf]
      %v200 = vld [vmem:[%s1 + $0x24] sm:$0xf]
      %v201 = vld [vmem:[%s1 + $0x28] sm:$0xf]
      %v202 = vld [vmem:[%s1 + $0x2c] sm:$0xf]
      %v203 = vld [vmem:[%s1 + $0x30] sm:$0xf]
      %v204 = vld [vmem:[%s1 + $0x34] sm:$0xf]
      %v205 = vld [vmem:[%s1 + $0x38] sm:$0xf]
      %v206 = vld [vmem:[%s1 + $0x3c] sm:$0xf]
      %v207 = vld [vmem:[%s2] sm:$0x1]
      %v209 = vlaneseq
      %v210 = vshrl.u32 %v209, 7
      %v211 = vsub.s32 0, %v210
      %v212 = vrot.slane %v207, %v211
      %v230 = vunpack.c.l.b16 %v175
      %v231 = vunpack.c.l.b16 %v176
      %v232 = vunpack.c.l.b16 %v177
      %v233 = vunpack.c.l.b16 %v178
      %v234 = vunpack.c.l.b16 %v179
      %v235 = vunpack.c.l.b16 %v180
      %v236 = vunpack.c.l.b16 %v181
      %v237 = vunpack.c.l.b16 %v182
      %v238 = vunpack.c.l.b16 %v183
      %v239 = vunpack.c.l.b16 %v184
      %v240 = vunpack.c.l.b16 %v185
      %v241 = vunpack.c.l.b16 %v186
      %v242 = vunpack.c.l.b16 %v187
      %v243 = vunpack.c.l.b16 %v188
      %v244 = vunpack.c.l.b16 %v189
      %v245 = vunpack.c.l.b16 %v190
      %v246 = vpack.c.b16 %v231, %v230
      %v247 = vpack.c.b16 %v233, %v232
      %v248 = vpack.c.b16 %v235, %v234
      %v249 = vpack.c.b16 %v237, %v236
      %v250 = vpack.c.b16 %v239, %v238
      %v251 = vpack.c.b16 %v241, %v240
      %v252 = vpack.c.b16 %v243, %v242
      %v253 = vpack.c.b16 %v245, %v244
      %v278 = vunpack.c.l.b16 %v191
      %v279 = vunpack.c.l.b16 %v192
      %v280 = vunpack.c.l.b16 %v193
      %v281 = vunpack.c.l.b16 %v194
      %v282 = vunpack.c.l.b16 %v195
      %v283 = vunpack.c.l.b16 %v196
      %v284 = vunpack.c.l.b16 %v197
      %v285 = vunpack.c.l.b16 %v198
      %v286 = vunpack.c.l.b16 %v199
      %v287 = vunpack.c.l.b16 %v200
      %v288 = vunpack.c.l.b16 %v201
      %v289 = vunpack.c.l.b16 %v202
      %v290 = vunpack.c.l.b16 %v203
      %v291 = vunpack.c.l.b16 %v204
      %v292 = vunpack.c.l.b16 %v205
      %v293 = vunpack.c.l.b16 %v206
      %v294 = vpack.c.b16 %v279, %v278
      %v295 = vpack.c.b16 %v281, %v280
      %v296 = vpack.c.b16 %v283, %v282
      %v297 = vpack.c.b16 %v285, %v284
      %v298 = vpack.c.b16 %v287, %v286
      %v299 = vpack.c.b16 %v289, %v288
      %v300 = vpack.c.b16 %v291, %v290
      %v301 = vpack.c.b16 %v293, %v292
      %310 = vmatprep.subr.bf16.mxu0 0
      %311 = vmatpush1.bf16.msra.mxu0 %v294
      %312 = vmatprep.subr.bf16.mxu0 0
      %313 = vmatpush1.bf16.msra.mxu0 %v295
      %314 = vmatprep.subr.bf16.mxu0 0
      %315 = vmatpush1.bf16.msra.mxu0 %v296
      %316 = vmatprep.subr.bf16.mxu0 0
      %317 = vmatpush1.bf16.msra.mxu0 %v297
      %318 = vmatprep.subr.bf16.mxu0 0
      %319 = vmatpush1.bf16.msra.mxu0 %v298
      %320 = vmatprep.subr.bf16.mxu0 0
      %321 = vmatpush1.bf16.msra.mxu0 %v299
      %322 = vmatprep.subr.bf16.mxu0 0
      %323 = vmatpush1.bf16.msra.mxu0 %v300
      %324 = vmatprep.subr.bf16.mxu0 0
      %325 = vmatpush1.bf16.msra.mxu0 %v301
      %326 = vmatprep.subr.bf16.mxu0 0
      %327 = vmatpush1.bf16.msra.mxu0 0
      %328 = vmatprep.subr.bf16.mxu0 0
      %329 = vmatpush1.bf16.msra.mxu0 0
      %330 = vmatprep.subr.bf16.mxu0 0
      %331 = vmatpush1.bf16.msra.mxu0 0
      %332 = vmatprep.subr.bf16.mxu0 0
      %333 = vmatpush1.bf16.msra.mxu0 0
      %334 = vmatprep.subr.bf16.mxu0 0
      %335 = vmatpush1.bf16.msra.mxu0 0
      %336 = vmatprep.subr.bf16.mxu0 0
      %337 = vmatpush1.bf16.msra.mxu0 0
      %338 = vmatprep.subr.bf16.mxu0 0
      %339 = vmatpush1.bf16.msra.mxu0 0
      %340 = vmatprep.subr.bf16.mxu0 0
      %341 = vmatpush1.bf16.msra.mxu0 0
      %342 = vmatprep.mubr.bf16.mxu0 0
      %343 = vmatmul.mubr.bf16.gmra.mrb[0].mxu0 %v246
      %v344 = vpop.f32.mrb[0].mxu0
      %v345 = vadd.f32 %v212, %v344
      %v346 = vpop.f32.mrb[0].mxu0
      %v347 = vpop.f32.mrb[0].mxu0
      %v348 = vadd.f32 %v212, %v347
      %v349 = vpop.f32.mrb[0].mxu0
      %350 = vmatprep.mubr.bf16.mxu0 0
      %351 = vmatmul.mubr.bf16.gmra.mrb[0].mxu0 %v247
      %v352 = vpop.f32.mrb[0].mxu0
      %v353 = vadd.f32 %v212, %v352
      %v354 = vpop.f32.mrb[0].mxu0
      %v355 = vpop.f32.mrb[0].mxu0
      %v356 = vadd.f32 %v212, %v355
      %v357 = vpop.f32.mrb[0].mxu0
      %358 = vmatprep.mubr.bf16.mxu0 0
      %359 = vmatmul.mubr.bf16.gmra.mrb[0].mxu0 %v248
      %v360 = vpop.f32.mrb[0].mxu0
      %v361 = vadd.f32 %v212, %v360
      %v362 = vpop.f32.mrb[0].mxu0
      %v363 = vpop.f32.mrb[0].mxu0
      %v364 = vadd.f32 %v212, %v363
      %v365 = vpop.f32.mrb[0].mxu0
      %366 = vmatprep.mubr.bf16.mxu0 0
      %367 = vmatmul.mubr.bf16.gmra.mrb[0].mxu0 %v249
      %v368 = vpop.f32.mrb[0].mxu0
      %v369 = vadd.f32 %v212, %v368
      %v370 = vpop.f32.mrb[0].mxu0
      %v371 = vpop.f32.mrb[0].mxu0
      %v372 = vadd.f32 %v212, %v371
      %v373 = vpop.f32.mrb[0].mxu0
      %374 = vmatprep.mubr.bf16.mxu0 0
      %375 = vmatmul.mubr.bf16.gmra.mrb[0].mxu0 %v250
      %v376 = vpop.f32.mrb[0].mxu0
      %v377 = vadd.f32 %v212, %v376
      %v378 = vpop.f32.mrb[0].mxu0
      %v379 = vpop.f32.mrb[0].mxu0
      %v380 = vadd.f32 %v212, %v379
      %v381 = vpop.f32.mrb[0].mxu0
      %382 = vmatprep.mubr.bf16.mxu0 0
      %383 = vmatmul.mubr.bf16.gmra.mrb[0].mxu0 %v251
      %v384 = vpop.f32.mrb[0].mxu0
      %v385 = vadd.f32 %v212, %v384
      %v386 = vpop.f32.mrb[0].mxu0
      %v387 = vpop.f32.mrb[0].mxu0
      %v388 = vadd.f32 %v212, %v387
      %v389 = vpop.f32.mrb[0].mxu0
      %390 = vmatprep.mubr.bf16.mxu0 0
      %391 = vmatmul.mubr.bf16.gmra.mrb[0].mxu0 %v252
      %v392 = vpop.f32.mrb[0].mxu0
      %v393 = vadd.f32 %v212, %v392
      %v394 = vpop.f32.mrb[0].mxu0
      %v395 = vpop.f32.mrb[0].mxu0
      %v396 = vadd.f32 %v212, %v395
      %v397 = vpop.f32.mrb[0].mxu0
      %398 = vmatprep.mubr.bf16.mxu0 0
      %399 = vmatmul.mubr.bf16.gmra.mrb[0].mxu0 %v253
      %v400 = vpop.f32.mrb[0].mxu0
      %v401 = vadd.f32 %v212, %v400
      %v402 = vpop.f32.mrb[0].mxu0
      %v403 = vpop.f32.mrb[0].mxu0
      %v404 = vadd.f32 %v212, %v403
      %v405 = vpop.f32.mrb[0].mxu0
      %406 = vdwg.mxu0
      %v407 = vmax.f32 %v345, 0.0
      %v408 = vmax.f32 %v348, 0.0
      %v409 = vmax.f32 %v353, 0.0
      %v410 = vmax.f32 %v356, 0.0
      %v411 = vmax.f32 %v361, 0.0
      %v412 = vmax.f32 %v364, 0.0
      %v413 = vmax.f32 %v369, 0.0
      %v414 = vmax.f32 %v372, 0.0
      %v415 = vmax.f32 %v377, 0.0
      %v416 = vmax.f32 %v380, 0.0
      %v417 = vmax.f32 %v385, 0.0
      %v418 = vmax.f32 %v388, 0.0
      %v419 = vmax.f32 %v393, 0.0
      %v420 = vmax.f32 %v396, 0.0
      %v421 = vmax.f32 %v401, 0.0
      %v422 = vmax.f32 %v404, 0.0
      %v423 = vpack.c.bf16 %v408, %v407
      %v424 = vpack.c.bf16 %v410, %v409
      %v425 = vpack.c.bf16 %v412, %v411
      %v426 = vpack.c.bf16 %v414, %v413
      %v427 = vpack.c.bf16 %v416, %v415
      %v428 = vpack.c.bf16 %v418, %v417
      %v429 = vpack.c.bf16 %v420, %v419
      %v430 = vpack.c.bf16 %v422, %v421
      %v439 = vunpack.c.l.b16 %v423
      %v440 = vunpack.c.h.b16 %v423
      %v441 = vunpack.c.l.b16 %v424
      %v442 = vunpack.c.h.b16 %v424
      %v443 = vunpack.c.l.b16 %v425
      %v444 = vunpack.c.h.b16 %v425
      %v445 = vunpack.c.l.b16 %v426
      %v446 = vunpack.c.h.b16 %v426
      %v447 = vunpack.c.l.b16 %v427
      %v448 = vunpack.c.h.b16 %v427
      %v449 = vunpack.c.l.b16 %v428
      %v450 = vunpack.c.h.b16 %v428
      %v451 = vunpack.c.l.b16 %v429
      %v452 = vunpack.c.h.b16 %v429
      %v453 = vunpack.c.l.b16 %v430
      %v454 = vunpack.c.h.b16 %v430
      %v455 = vpack.c.b16 %v439, %v439
      %v456 = vpack.c.b16 %v440, %v440
      %v457 = vpack.c.b16 %v441, %v441
      %v458 = vpack.c.b16 %v442, %v442
      %v459 = vpack.c.b16 %v443, %v443
      %v460 = vpack.c.b16 %v444, %v444
      %v461 = vpack.c.b16 %v445, %v445
      %v462 = vpack.c.b16 %v446, %v446
      %v463 = vpack.c.b16 %v447, %v447
      %v464 = vpack.c.b16 %v448, %v448
      %v465 = vpack.c.b16 %v449, %v449
      %v466 = vpack.c.b16 %v450, %v450
      %v467 = vpack.c.b16 %v451, %v451
      %v468 = vpack.c.b16 %v452, %v452
      %v469 = vpack.c.b16 %v453, %v453
      %v470 = vpack.c.b16 %v454, %v454
      %vm487 = vcmask 125952
      %488 = vst.msk [vmem:[%s172] sm:$0xf] %vm487, %v455
      %489 = vst.msk [vmem:[%s172 + $0x4] sm:$0xf] %vm487, %v456
      %490 = vst.msk [vmem:[%s172 + $0x8] sm:$0xf] %vm487, %v457
      %491 = vst.msk [vmem:[%s172 + $0xc] sm:$0xf] %vm487, %v458
      %492 = vst.msk [vmem:[%s172 + $0x10] sm:$0xf] %vm487, %v459
      %493 = vst.msk [vmem:[%s172 + $0x14] sm:$0xf] %vm487, %v460
      %494 = vst.msk [vmem:[%s172 + $0x18] sm:$0xf] %vm487, %v461
      %495 = vst.msk [vmem:[%s172 + $0x1c] sm:$0xf] %vm487, %v462
      %496 = vst.msk [vmem:[%s172 + $0x20] sm:$0xf] %vm487, %v463
      %497 = vst.msk [vmem:[%s172 + $0x24] sm:$0xf] %vm487, %v464
      %498 = vst.msk [vmem:[%s172 + $0x28] sm:$0xf] %vm487, %v465
      %499 = vst.msk [vmem:[%s172 + $0x2c] sm:$0xf] %vm487, %v466
      %500 = vst.msk [vmem:[%s172 + $0x30] sm:$0xf] %vm487, %v467
      %501 = vst.msk [vmem:[%s172 + $0x34] sm:$0xf] %vm487, %v468
      %502 = vst.msk [vmem:[%s172 + $0x38] sm:$0xf] %vm487, %v469
      %503 = vst.msk [vmem:[%s172 + $0x3c] sm:$0xf] %vm487, %v470
      %s504 = smul.u32 16, %s14
      %p505 = scmp.lt.s32.totalorder %s504, 63
      %s506 = scalar_select %p505, %s504, 63
      %s507 = smul.addr %s506, 4
      %s508 = scalar_lea.vmem %s3, %s507
      // Predicated region
      $region33: #{dqn_forward.3} parent=31 // pred_check
        %p509 = pneg %p100
      $region34: #{dqn_forward.3} parent=31 // pred_check_branch
        %511 = sbr.rel (%p509) target = $region36
      $region35: #{dqn_forward.3} parent=31 // pred_region
        %s512 = smul.u32 16, %s14
      $region36: #{dqn_forward.3} parent=31 // pred_fallthru
        _
    $region32: #{dqn_forward.3} parent=5 // pred_fallthru
      _
    %p513 = scmp.le.s32.totalorder 2, %s9
    // Predicated region
    $region37: #{dqn_forward.3} parent=5 // pred_check
      %p514 = pneg %p513
    $region38: #{dqn_forward.3} parent=5 // pred_check_branch
      %516 = sbr.rel (%p514) target = $region40
    $region39: #{dqn_forward.3} parent=5 // pred_region
      %s517 = ssub.s32 %s9, 2
      // Predicated region
      $region41: #{dqn_forward.3} parent=39 // pred_check
        %p518 = pneg %p106
      $region42: #{dqn_forward.3} parent=39 // pred_check_branch
        %520 = sbr.rel (%p518) target = $region44
      $region43: #{dqn_forward.3} parent=39 // pred_region
        %s521 = smul.u32 16, %s15
        %p522 = scmp.lt.s32.totalorder %s521, 63
        %s523 = scalar_select %p522, %s521, 63
        %s524 = smul.addr %s523, 4
        %s525 = scalar_lea.vmem %s3, %s524
      $region44: #{dqn_forward.3} parent=39 // pred_fallthru
        _
    $region40: #{dqn_forward.3} parent=5 // pred_fallthru
      _
  $region6: #{dqn_forward.3} parent=0 // loop_footer
    %s13 = sadd.s32 1, %s9
  $region7: #{dqn_forward.3} parent=0 // loop_footer_branch
    %8 = sbr.rel target = $region3
  $region8: #{dqn_forward.3} parent=0 // loop_exit
    _

// kernel: dqn_forward.4
$region0: #{dqn_forward.4}
  #allocation0 [shape = 'u32[]', space=smem, size = 0x4, offset = 0x4, fixed_abs, tag = 'smem constant byte address 0x4 - core index']
  #allocation1 [shape = 'u32[144,128]{1,0:T(1,128)}', space=vmem, size = 0x12000, scoped, tag = 'internal scratch']
  %s0 = inlined_call_operand.vmem [shape: bf16[128,256], index: 0, kind: input, shape index: {}]
  %s1 = inlined_call_operand.vmem [shape: bf16[256,32], index: 1, kind: input, shape index: {}]
  %s2 = inlined_call_operand.vmem [shape: f32[1,32], index: 2, kind: input, shape index: {}]
  %s3 = inlined_call_operand.vmem [shape: bf16[128,32], index: 3, kind: output, shape index: {}]
  %s4 = sld [smem:[#allocation0]]
  $region22: #{dqn_forward.4} parent=0
    _
  %s6 = ssub.s32 1, %s4
  %s7 = scalar_select 0, %s6, %s4
  // Predicated region
  $region2: #{dqn_forward.4} parent=0 // pred_check
    _
  $region3: #{dqn_forward.4} parent=0 // pred_check_branch
    %9 = sbr.rel (0) target = $region5
  $region4: #{dqn_forward.4} parent=0 // pred_region
    _
  $region5: #{dqn_forward.4} parent=0 // pred_fallthru
    _
  // Predicated region
  $region6: #{dqn_forward.4} parent=0 // pred_check
    _
  $region7: #{dqn_forward.4} parent=0 // pred_check_branch
    %11 = sbr.rel (0) target = $region9
  $region8: #{dqn_forward.4} parent=0 // pred_region
    _
  $region9: #{dqn_forward.4} parent=0 // pred_fallthru
    _
  // Predicated region
  $region10: #{dqn_forward.4} parent=0 // pred_check
    _
  $region11: #{dqn_forward.4} parent=0 // pred_check_branch
    %13 = sbr.rel (0) target = $region13
  $region12: #{dqn_forward.4} parent=0 // pred_region
    _
  $region13: #{dqn_forward.4} parent=0 // pred_fallthru
    _
  %v15 = vld [vmem:[%s0] sm:$0xff]
  %v16 = vld [vmem:[%s0 + $0x8] sm:$0xff]
  %v17 = vld [vmem:[%s0 + $0x10] sm:$0xff]
  %v18 = vld [vmem:[%s0 + $0x18] sm:$0xff]
  %v19 = vld [vmem:[%s0 + $0x20] sm:$0xff]
  %v20 = vld [vmem:[%s0 + $0x28] sm:$0xff]
  %v21 = vld [vmem:[%s0 + $0x30] sm:$0xff]
  %v22 = vld [vmem:[%s0 + $0x38] sm:$0xff]
  %v23 = vld [vmem:[%s0 + $0x40] sm:$0xff]
  %v24 = vld [vmem:[%s0 + $0x48] sm:$0xff]
  %v25 = vld [vmem:[%s0 + $0x50] sm:$0xff]
  %v26 = vld [vmem:[%s0 + $0x58] sm:$0xff]
  %v27 = vld [vmem:[%s0 + $0x60] sm:$0xff]
  %v28 = vld [vmem:[%s0 + $0x68] sm:$0xff]
  %v29 = vld [vmem:[%s0 + $0x70] sm:$0xff]
  %v30 = vld [vmem:[%s0 + $0x78] sm:$0xff]
  %v31 = vld [vmem:[%s1] sm:$0xf]
  %v32 = vld [vmem:[%s1 + $0x4] sm:$0xf]
  %v33 = vld [vmem:[%s1 + $0x8] sm:$0xf]
  %v34 = vld [vmem:[%s1 + $0xc] sm:$0xf]
  %v35 = vld [vmem:[%s1 + $0x10] sm:$0xf]
  %v36 = vld [vmem:[%s1 + $0x14] sm:$0xf]
  %v37 = vld [vmem:[%s1 + $0x18] sm:$0xf]
  %v38 = vld [vmem:[%s1 + $0x1c] sm:$0xf]
  %v39 = vld [vmem:[%s1 + $0x20] sm:$0xf]
  %v40 = vld [vmem:[%s1 + $0x24] sm:$0xf]
  %v41 = vld [vmem:[%s1 + $0x28] sm:$0xf]
  %v42 = vld [vmem:[%s1 + $0x2c] sm:$0xf]
  %v43 = vld [vmem:[%s1 + $0x30] sm:$0xf]
  %v44 = vld [vmem:[%s1 + $0x34] sm:$0xf]
  %v45 = vld [vmem:[%s1 + $0x38] sm:$0xf]
  %v46 = vld [vmem:[%s1 + $0x3c] sm:$0xf]
  %v47 = vld [vmem:[%s1 + $0x40] sm:$0xf]
  %v48 = vld [vmem:[%s1 + $0x44] sm:$0xf]
  %v49 = vld [vmem:[%s1 + $0x48] sm:$0xf]
  %v50 = vld [vmem:[%s1 + $0x4c] sm:$0xf]
  %v51 = vld [vmem:[%s1 + $0x50] sm:$0xf]
  %v52 = vld [vmem:[%s1 + $0x54] sm:$0xf]
  %v53 = vld [vmem:[%s1 + $0x58] sm:$0xf]
  %v54 = vld [vmem:[%s1 + $0x5c] sm:$0xf]
  %v55 = vld [vmem:[%s1 + $0x60] sm:$0xf]
  %v56 = vld [vmem:[%s1 + $0x64] sm:$0xf]
  %v57 = vld [vmem:[%s1 + $0x68] sm:$0xf]
  %v58 = vld [vmem:[%s1 + $0x6c] sm:$0xf]
  %v59 = vld [vmem:[%s1 + $0x70] sm:$0xf]
  %v60 = vld [vmem:[%s1 + $0x74] sm:$0xf]
  %v61 = vld [vmem:[%s1 + $0x78] sm:$0xf]
  %v62 = vld [vmem:[%s1 + $0x7c] sm:$0xf]
  %v63 = vld [vmem:[%s2] sm:$0x1]
  %v65 = vlaneseq
  %v66 = vshrl.u32 %v65, 7
  %v67 = vsub.s32 0, %v66
  %v68 = vrot.slane %v63, %v67
  %v86 = vunpack.c.l.b16 %v15
  %v87 = vunpack.c.h.b16 %v15
  %v88 = vunpack.c.l.b16 %v16
  %v89 = vunpack.c.h.b16 %v16
  %v90 = vunpack.c.l.b16 %v17
  %v91 = vunpack.c.h.b16 %v17
  %v92 = vunpack.c.l.b16 %v18
  %v93 = vunpack.c.h.b16 %v18
  %v94 = vunpack.c.l.b16 %v19
  %v95 = vunpack.c.h.b16 %v19
  %v96 = vunpack.c.l.b16 %v20
  %v97 = vunpack.c.h.b16 %v20
  %v98 = vunpack.c.l.b16 %v21
  %v99 = vunpack.c.h.b16 %v21
  %v100 = vunpack.c.l.b16 %v22
  %v101 = vunpack.c.h.b16 %v22
  %v102 = vunpack.c.l.b16 %v23
  %v103 = vunpack.c.h.b16 %v23
  %v104 = vunpack.c.l.b16 %v24
  %v105 = vunpack.c.h.b16 %v24
  %v106 = vunpack.c.l.b16 %v25
  %v107 = vunpack.c.h.b16 %v25
  %v108 = vunpack.c.l.b16 %v26
  %v109 = vunpack.c.h.b16 %v26
  %v110 = vunpack.c.l.b16 %v27
  %v111 = vunpack.c.h.b16 %v27
  %v112 = vunpack.c.l.b16 %v28
  %v113 = vunpack.c.h.b16 %v28
  %v114 = vunpack.c.l.b16 %v29
  %v115 = vunpack.c.h.b16 %v29
  %v116 = vunpack.c.l.b16 %v30
  %v117 = vunpack.c.h.b16 %v30
  %v118 = vpack.c.b16 %v88, %v86
  %v119 = vpack.c.b16 %v89, %v87
  %v120 = vpack.c.b16 %v92, %v90
  %v121 = vpack.c.b16 %v93, %v91
  %v122 = vpack.c.b16 %v96, %v94
  %v123 = vpack.c.b16 %v97, %v95
  %v124 = vpack.c.b16 %v100, %v98
  %v125 = vpack.c.b16 %v101, %v99
  %v126 = vpack.c.b16 %v104, %v102
  %v127 = vpack.c.b16 %v105, %v103
  %v128 = vpack.c.b16 %v108, %v106
  %v129 = vpack.c.b16 %v109, %v107
  %v130 = vpack.c.b16 %v112, %v110
  %v131 = vpack.c.b16 %v113, %v111
  %v132 = vpack.c.b16 %v116, %v114
  %v133 = vpack.c.b16 %v117, %v115
  %v182 = vunpack.c.l.b16 %v31
  %v183 = vunpack.c.l.b16 %v32
  %v184 = vunpack.c.l.b16 %v33
  %v185 = vunpack.c.l.b16 %v34
  %v186 = vunpack.c.l.b16 %v35
  %v187 = vunpack.c.l.b16 %v36
  %v188 = vunpack.c.l.b16 %v37
  %v189 = vunpack.c.l.b16 %v38
  %v190 = vunpack.c.l.b16 %v39
  %v191 = vunpack.c.l.b16 %v40
  %v192 = vunpack.c.l.b16 %v41
  %v193 = vunpack.c.l.b16 %v42
  %v194 = vunpack.c.l.b16 %v43
  %v195 = vunpack.c.l.b16 %v44
  %v196 = vunpack.c.l.b16 %v45
  %v197 = vunpack.c.l.b16 %v46
  %v198 = vunpack.c.l.b16 %v47
  %v199 = vunpack.c.l.b16 %v48
  %v200 = vunpack.c.l.b16 %v49
  %v201 = vunpack.c.l.b16 %v50
  %v202 = vunpack.c.l.b16 %v51
  %v203 = vunpack.c.l.b16 %v52
  %v204 = vunpack.c.l.b16 %v53
  %v205 = vunpack.c.l.b16 %v54
  %v206 = vunpack.c.l.b16 %v55
  %v207 = vunpack.c.l.b16 %v56
  %v208 = vunpack.c.l.b16 %v57
  %v209 = vunpack.c.l.b16 %v58
  %v210 = vunpack.c.l.b16 %v59
  %v211 = vunpack.c.l.b16 %v60
  %v212 = vunpack.c.l.b16 %v61
  %v213 = vunpack.c.l.b16 %v62
  %v214 = vpack.c.b16 %v183, %v182
  %v215 = vpack.c.b16 %v185, %v184
  %v216 = vpack.c.b16 %v187, %v186
  %v217 = vpack.c.b16 %v189, %v188
  %v218 = vpack.c.b16 %v191, %v190
  %v219 = vpack.c.b16 %v193, %v192
  %v220 = vpack.c.b16 %v195, %v194
  %v221 = vpack.c.b16 %v197, %v196
  %v222 = vpack.c.b16 %v199, %v198
  %v223 = vpack.c.b16 %v201, %v200
  %v224 = vpack.c.b16 %v203, %v202
  %v225 = vpack.c.b16 %v205, %v204
  %v226 = vpack.c.b16 %v207, %v206
  %v227 = vpack.c.b16 %v209, %v208
  %v228 = vpack.c.b16 %v211, %v210
  %v229 = vpack.c.b16 %v213, %v212
  %246 = vmatprep.subr.bf16.mxu0 0
  %247 = vmatpush1.bf16.msra.mxu0 %v214
  %248 = vmatprep.subr.bf16.mxu0 0
  %249 = vmatpush1.bf16.msra.mxu0 %v215
  %250 = vmatprep.subr.bf16.mxu0 0
  %251 = vmatpush1.bf16.msra.mxu0 %v216
  %252 = vmatprep.subr.bf16.mxu0 0
  %253 = vmatpush1.bf16.msra.mxu0 %v217
  %254 = vmatprep.subr.bf16.mxu0 0
  %255 = vmatpush1.bf16.msra.mxu0 %v218
  %256 = vmatprep.subr.bf16.mxu0 0
  %257 = vmatpush1.bf16.msra.mxu0 %v219
  %258 = vmatprep.subr.bf16.mxu0 0
  %259 = vmatpush1.bf16.msra.mxu0 %v220
  %260 = vmatprep.subr.bf16.mxu0 0
  %261 = vmatpush1.bf16.msra.mxu0 %v221
  %262 = vmatprep.subr.bf16.mxu0 0
  %263 = vmatpush1.bf16.msra.mxu0 %v222
  %264 = vmatprep.subr.bf16.mxu0 0
  %265 = vmatpush1.bf16.msra.mxu0 %v223
  %266 = vmatprep.subr.bf16.mxu0 0
  %267 = vmatpush1.bf16.msra.mxu0 %v224
  %268 = vmatprep.subr.bf16.mxu0 0
  %269 = vmatpush1.bf16.msra.mxu0 %v225
  %270 = vmatprep.subr.bf16.mxu0 0
  %271 = vmatpush1.bf16.msra.mxu0 %v226
  %272 = vmatprep.subr.bf16.mxu0 0
  %273 = vmatpush1.bf16.msra.mxu0 %v227
  %274 = vmatprep.subr.bf16.mxu0 0
  %275 = vmatpush1.bf16.msra.mxu0 %v228
  %276 = vmatprep.subr.bf16.mxu0 0
  %277 = vmatpush1.bf16.msra.mxu0 %v229
  %278 = vmatprep.mubr.bf16.mxu0 %v119
  %279 = vmatmul.mubr.bf16.gmra.mrb[0].mxu0 %v118
  %v280 = vpop.f32.mrb[0].mxu0
  %v281 = vadd.f32 %v68, %v280
  %v282 = vpop.f32.mrb[0].mxu0
  %v283 = vpop.f32.mrb[0].mxu0
  %v284 = vadd.f32 %v68, %v283
  %v285 = vpop.f32.mrb[0].mxu0
  %286 = vmatprep.mubr.bf16.mxu0 %v121
  %287 = vmatmul.mubr.bf16.gmra.mrb[0].mxu0 %v120
  %v288 = vpop.f32.mrb[0].mxu0
  %v289 = vadd.f32 %v68, %v288
  %v290 = vpop.f32.mrb[0].mxu0
  %v291 = vpop.f32.mrb[0].mxu0
  %v292 = vadd.f32 %v68, %v291
  %v293 = vpop.f32.mrb[0].mxu0
  %294 = vmatprep.mubr.bf16.mxu0 %v123
  %295 = vmatmul.mubr.bf16.gmra.mrb[0].mxu0 %v122
  %v296 = vpop.f32.mrb[0].mxu0
  %v297 = vadd.f32 %v68, %v296
  %v298 = vpop.f32.mrb[0].mxu0
  %v299 = vpop.f32.mrb[0].mxu0
  %v300 = vadd.f32 %v68, %v299
  %v301 = vpop.f32.mrb[0].mxu0
  %302 = vmatprep.mubr.bf16.mxu0 %v125
  %303 = vmatmul.mubr.bf16.gmra.mrb[0].mxu0 %v124
  %v304 = vpop.f32.mrb[0].mxu0
  %v305 = vadd.f32 %v68, %v304
  %v306 = vpop.f32.mrb[0].mxu0
  %v307 = vpop.f32.mrb[0].mxu0
  %v308 = vadd.f32 %v68, %v307
  %v309 = vpop.f32.mrb[0].mxu0
  %310 = vmatprep.mubr.bf16.mxu0 %v127
  %311 = vmatmul.mubr.bf16.gmra.mrb[0].mxu0 %v126
  %v312 = vpop.f32.mrb[0].mxu0
  %v313 = vadd.f32 %v68, %v312
  %v314 = vpop.f32.mrb[0].mxu0
  %v315 = vpop.f32.mrb[0].mxu0
  %v316 = vadd.f32 %v68, %v315
  %v317 = vpop.f32.mrb[0].mxu0
  %318 = vmatprep.mubr.bf16.mxu0 %v129
  %319 = vmatmul.mubr.bf16.gmra.mrb[0].mxu0 %v128
  %v320 = vpop.f32.mrb[0].mxu0
  %v321 = vadd.f32 %v68, %v320
  %v322 = vpop.f32.mrb[0].mxu0
  %v323 = vpop.f32.mrb[0].mxu0
  %v324 = vadd.f32 %v68, %v323
  %v325 = vpop.f32.mrb[0].mxu0
  %326 = vmatprep.mubr.bf16.mxu0 %v131
  %327 = vmatmul.mubr.bf16.gmra.mrb[0].mxu0 %v130
  %v328 = vpop.f32.mrb[0].mxu0
  %v329 = vadd.f32 %v68, %v328
  %v330 = vpop.f32.mrb[0].mxu0
  %v331 = vpop.f32.mrb[0].mxu0
  %v332 = vadd.f32 %v68, %v331
  %v333 = vpop.f32.mrb[0].mxu0
  %334 = vmatprep.mubr.bf16.mxu0 %v133
  %335 = vmatmul.mubr.bf16.gmra.mrb[0].mxu0 %v132
  %v336 = vpop.f32.mrb[0].mxu0
  %v337 = vadd.f32 %v68, %v336
  %v338 = vpop.f32.mrb[0].mxu0
  %v339 = vpop.f32.mrb[0].mxu0
  %v340 = vadd.f32 %v68, %v339
  %v341 = vpop.f32.mrb[0].mxu0
  %342 = vdwg.mxu0
  %v343 = vmax.f32 %v281, 0.0
  %v344 = vmax.f32 %v284, 0.0
  %v345 = vmax.f32 %v289, 0.0
  %v346 = vmax.f32 %v292, 0.0
  %v347 = vmax.f32 %v297, 0.0
  %v348 = vmax.f32 %v300, 0.0
  %v349 = vmax.f32 %v305, 0.0
  %v350 = vmax.f32 %v308, 0.0
  %v351 = vmax.f32 %v313, 0.0
  %v352 = vmax.f32 %v316, 0.0
  %v353 = vmax.f32 %v321, 0.0
  %v354 = vmax.f32 %v324, 0.0
  %v355 = vmax.f32 %v329, 0.0
  %v356 = vmax.f32 %v332, 0.0
  %v357 = vmax.f32 %v337, 0.0
  %v358 = vmax.f32 %v340, 0.0
  %v359 = vpack.c.bf16 %v344, %v343
  %v360 = vpack.c.bf16 %v346, %v345
  %v361 = vpack.c.bf16 %v348, %v347
  %v362 = vpack.c.bf16 %v350, %v349
  %v363 = vpack.c.bf16 %v352, %v351
  %v364 = vpack.c.bf16 %v354, %v353
  %v365 = vpack.c.bf16 %v356, %v355
  %v366 = vpack.c.bf16 %v358, %v357
  %v375 = vunpack.c.l.b16 %v359
  %v376 = vunpack.c.h.b16 %v359
  %v377 = vunpack.c.l.b16 %v360
  %v378 = vunpack.c.h.b16 %v360
  %v379 = vunpack.c.l.b16 %v361
  %v380 = vunpack.c.h.b16 %v361
  %v381 = vunpack.c.l.b16 %v362
  %v382 = vunpack.c.h.b16 %v362
  %v383 = vunpack.c.l.b16 %v363
  %v384 = vunpack.c.h.b16 %v363
  %v385 = vunpack.c.l.b16 %v364
  %v386 = vunpack.c.h.b16 %v364
  %v387 = vunpack.c.l.b16 %v365
  %v388 = vunpack.c.h.b16 %v365
  %v389 = vunpack.c.l.b16 %v366
  %v390 = vunpack.c.h.b16 %v366
  %v391 = vpack.c.b16 %v375, %v375
  %v392 = vpack.c.b16 %v376, %v376
  %v393 = vpack.c.b16 %v377, %v377
  %v394 = vpack.c.b16 %v378, %v378
  %v395 = vpack.c.b16 %v379, %v379
  %v396 = vpack.c.b16 %v380, %v380
  %v397 = vpack.c.b16 %v381, %v381
  %v398 = vpack.c.b16 %v382, %v382
  %v399 = vpack.c.b16 %v383, %v383
  %v400 = vpack.c.b16 %v384, %v384
  %v401 = vpack.c.b16 %v385, %v385
  %v402 = vpack.c.b16 %v386, %v386
  %v403 = vpack.c.b16 %v387, %v387
  %v404 = vpack.c.b16 %v388, %v388
  %v405 = vpack.c.b16 %v389, %v389
  %v406 = vpack.c.b16 %v390, %v390
  %vm423 = vcmask 257024
  %424 = vst.msk [vmem:[%s3] sm:$0xf] %vm423, %v391
  %425 = vst.msk [vmem:[%s3 + $0x4] sm:$0xf] %vm423, %v392
  %426 = vst.msk [vmem:[%s3 + $0x8] sm:$0xf] %vm423, %v393
  %427 = vst.msk [vmem:[%s3 + $0xc] sm:$0xf] %vm423, %v394
  %428 = vst.msk [vmem:[%s3 + $0x10] sm:$0xf] %vm423, %v395
  %429 = vst.msk [vmem:[%s3 + $0x14] sm:$0xf] %vm423, %v396
  %430 = vst.msk [vmem:[%s3 + $0x18] sm:$0xf] %vm423, %v397
  %431 = vst.msk [vmem:[%s3 + $0x1c] sm:$0xf] %vm423, %v398
  %432 = vst.msk [vmem:[%s3 + $0x20] sm:$0xf] %vm423, %v399
  %433 = vst.msk [vmem:[%s3 + $0x24] sm:$0xf] %vm423, %v400
  %434 = vst.msk [vmem:[%s3 + $0x28] sm:$0xf] %vm423, %v401
  %435 = vst.msk [vmem:[%s3 + $0x2c] sm:$0xf] %vm423, %v402
  %436 = vst.msk [vmem:[%s3 + $0x30] sm:$0xf] %vm423, %v403
  %437 = vst.msk [vmem:[%s3 + $0x34] sm:$0xf] %vm423, %v404
  %438 = vst.msk [vmem:[%s3 + $0x38] sm:$0xf] %vm423, %v405
  %439 = vst.msk [vmem:[%s3 + $0x3c] sm:$0xf] %vm423, %v406
  // Predicated region
  $region14: #{dqn_forward.4} parent=0 // pred_check
    _
  $region15: #{dqn_forward.4} parent=0 // pred_check_branch
    %441 = sbr.rel (0) target = $region17
  $region16: #{dqn_forward.4} parent=0 // pred_region
    _
  $region17: #{dqn_forward.4} parent=0 // pred_fallthru
    _
  // Predicated region
  $region18: #{dqn_forward.4} parent=0 // pred_check
    _
  $region19: #{dqn_forward.4} parent=0 // pred_check_branch
    %443 = sbr.rel (0) target = $region21
  $region20: #{dqn_forward.4} parent=0 // pred_region
    _
  $region21: #{dqn_forward.4} parent=0 // pred_fallthru
    _

// kernel: dqn_forward.5
$region0: #{dqn_forward.5}
  #allocation0 [shape = 'u32[]', space=smem, size = 0x4, offset = 0x4, fixed_abs, tag = 'smem constant byte address 0x4 - core index']
  #allocation1 [shape = 'u32[144,128]{1,0:T(1,128)}', space=vmem, size = 0x12000, scoped, tag = 'internal scratch']
  %s0 = inlined_call_operand.vmem [shape: bf16[8,2048], index: 0, kind: input, shape index: {}]
  %s1 = inlined_call_operand.vmem [shape: bf16[2048,128], index: 1, kind: input, shape index: {}]
  %s2 = inlined_call_operand.vmem [shape: f32[1,128], index: 2, kind: input, shape index: {}]
  %s3 = inlined_call_operand.vmem [shape: bf16[2,128,128], index: 3, kind: input, shape index: {}]
  %s4 = inlined_call_operand.vmem [shape: f32[2,1,128], index: 4, kind: input, shape index: {}]
  %s5 = inlined_call_operand.vmem [shape: bf16[128,128], index: 5, kind: input, shape index: {}]
  %s6 = inlined_call_operand.vmem [shape: f32[1,128], index: 6, kind: input, shape index: {}]
  %s7 = inlined_call_operand.vmem [shape: f32[8,128], index: 7, kind: output, shape index: {}]
  %s8 = sld [smem:[#allocation0]]
  $region38: #{dqn_forward.5} parent=0
    _
  %s10 = ssub.s32 1, %s8
  %s11 = scalar_select 0, %s10, %s8
  // Predicated region
  $region2: #{dqn_forward.5} parent=0 // pred_check
    _
  $region3: #{dqn_forward.5} parent=0 // pred_check_branch
    %13 = sbr.rel (0) target = $region5
  $region4: #{dqn_forward.5} parent=0 // pred_region
    _
  $region5: #{dqn_forward.5} parent=0 // pred_fallthru
    _
  // Predicated region
  $region6: #{dqn_forward.5} parent=0 // pred_check
    _
  $region7: #{dqn_forward.5} parent=0 // pred_check_branch
    %15 = sbr.rel (0) target = $region9
  $region8: #{dqn_forward.5} parent=0 // pred_region
    _
  $region9: #{dqn_forward.5} parent=0 // pred_fallthru
    _
  // Predicated region
  $region10: #{dqn_forward.5} parent=0 // pred_check
    _
  $region11: #{dqn_forward.5} parent=0 // pred_check_branch
    %17 = sbr.rel (0) target = $region13
  $region12: #{dqn_forward.5} parent=0 // pred_region
    _
  $region13: #{dqn_forward.5} parent=0 // pred_fallthru
    _
  // Predicated region
  $region14: #{dqn_forward.5} parent=0 // pred_check
    _
  $region15: #{dqn_forward.5} parent=0 // pred_check_branch
    %19 = sbr.rel (0) target = $region17
  $region16: #{dqn_forward.5} parent=0 // pred_region
    _
  $region17: #{dqn_forward.5} parent=0 // pred_fallthru
    _
  // Predicated region
  $region18: #{dqn_forward.5} parent=0 // pred_check
    _
  $region19: #{dqn_forward.5} parent=0 // pred_check_branch
    %21 = sbr.rel (0) target = $region21
  $region20: #{dqn_forward.5} parent=0 // pred_region
    _
  $region21: #{dqn_forward.5} parent=0 // pred_fallthru
    _
  // Predicated region
  $region22: #{dqn_forward.5} parent=0 // pred_check
    _
  $region23: #{dqn_forward.5} parent=0 // pred_check_branch
    %23 = sbr.rel (0) target = $region25
  $region24: #{dqn_forward.5} parent=0 // pred_region
    _
  $region25: #{dqn_forward.5} parent=0 // pred_fallthru
    _
  // Predicated region
  $region26: #{dqn_forward.5} parent=0 // pred_check
    _
  $region27: #{dqn_forward.5} parent=0 // pred_check_branch
    %25 = sbr.rel (0) target = $region29
  $region28: #{dqn_forward.5} parent=0 // pred_region
    _
  $region29: #{dqn_forward.5} parent=0 // pred_fallthru
    _
  %v27 = vld [vmem:[%s0] sm:$0xff]
  %v28 = vld [vmem:[%s0 + $0x8] sm:$0xff]
  %v29 = vld [vmem:[%s0 + $0x10] sm:$0xff]
  %v30 = vld [vmem:[%s0 + $0x18] sm:$0xff]
  %v31 = vld [vmem:[%s0 + $0x20] sm:$0xff]
  %v32 = vld [vmem:[%s0 + $0x28] sm:$0xff]
  %v33 = vld [vmem:[%s0 + $0x30] sm:$0xff]
  %v34 = vld [vmem:[%s0 + $0x38] sm:$0xff]
  %v35 = vld [vmem:[%s1] sm:$0xf]
  %v36 = vld [vmem:[%s1 + $0x4] sm:$0xf]
  %v37 = vld [vmem:[%s1 + $0x8] sm:$0xf]
  %v38 = vld [vmem:[%s1 + $0xc] sm:$0xf]
  %v39 = vld [vmem:[%s1 + $0x10] sm:$0xf]
  %v40 = vld [vmem:[%s1 + $0x14] sm:$0xf]
  %v41 = vld [vmem:[%s1 + $0x18] sm:$0xf]
  %v42 = vld [vmem:[%s1 + $0x1c] sm:$0xf]
  %v43 = vld [vmem:[%s1 + $0x20] sm:$0xf]
  %v44 = vld [vmem:[%s1 + $0x24] sm:$0xf]
  %v45 = vld [vmem:[%s1 + $0x28] sm:$0xf]
  %v46 = vld [vmem:[%s1 + $0x2c] sm:$0xf]
  %v47 = vld [vmem:[%s1 + $0x30] sm:$0xf]
  %v48 = vld [vmem:[%s1 + $0x34] sm:$0xf]
  %v49 = vld [vmem:[%s1 + $0x38] sm:$0xf]
  %v50 = vld [vmem:[%s1 + $0x3c] sm:$0xf]
  %v51 = vld [vmem:[%s1 + $0x40] sm:$0xf]
  %v52 = vld [vmem:[%s1 + $0x44] sm:$0xf]
  %v53 = vld [vmem:[%s1 + $0x48] sm:$0xf]
  %v54 = vld [vmem:[%s1 + $0x4c] sm:$0xf]
  %v55 = vld [vmem:[%s1 + $0x50] sm:$0xf]
  %v56 = vld [vmem:[%s1 + $0x54] sm:$0xf]
  %v57 = vld [vmem:[%s1 + $0x58] sm:$0xf]
  %v58 = vld [vmem:[%s1 + $0x5c] sm:$0xf]
  %v59 = vld [vmem:[%s1 + $0x60] sm:$0xf]
  %v60 = vld [vmem:[%s1 + $0x64] sm:$0xf]
  %v61 = vld [vmem:[%s1 + $0x68] sm:$0xf]
  %v62 = vld [vmem:[%s1 + $0x6c] sm:$0xf]
  %v63 = vld [vmem:[%s1 + $0x70] sm:$0xf]
  %v64 = vld [vmem:[%s1 + $0x74] sm:$0xf]
  %v65 = vld [vmem:[%s1 + $0x78] sm:$0xf]
  %v66 = vld [vmem:[%s1 + $0x7c] sm:$0xf]
  %v67 = vld [vmem:[%s1 + $0x80] sm:$0xf]
  %v68 = vld [vmem:[%s1 + $0x84] sm:$0xf]
  %v69 = vld [vmem:[%s1 + $0x88] sm:$0xf]
  %v70 = vld [vmem:[%s1 + $0x8c] sm:$0xf]
  %v71 = vld [vmem:[%s1 + $0x90] sm:$0xf]
  %v72 = vld [vmem:[%s1 + $0x94] sm:$0xf]
  %v73 = vld [vmem:[%s1 + $0x98] sm:$0xf]
  %v74 = vld [vmem:[%s1 + $0x9c] sm:$0xf]
  %v75 = vld [vmem:[%s1 + $0xa0] sm:$0xf]
  %v76 = vld [vmem:[%s1 + $0xa4] sm:$0xf]
  %v77 = vld [vmem:[%s1 + $0xa8] sm:$0xf]
  %v78 = vld [vmem:[%s1 + $0xac] sm:$0xf]
  %v79 = vld [vmem:[%s1 + $0xb0] sm:$0xf]
  %v80 = vld [vmem:[%s1 + $0xb4] sm:$0xf]
  %v81 = vld [vmem:[%s1 + $0xb8] sm:$0xf]
  %v82 = vld [vmem:[%s1 + $0xbc] sm:$0xf]
  %v83 = vld [vmem:[%s1 + $0xc0] sm:$0xf]
  %v84 = vld [vmem:[%s1 + $0xc4] sm:$0xf]
  %v85 = vld [vmem:[%s1 + $0xc8] sm:$0xf]
  %v86 = vld [vmem:[%s1 + $0xcc] sm:$0xf]
  %v87 = vld [vmem:[%s1 + $0xd0] sm:$0xf]
  %v88 = vld [vmem:[%s1 + $0xd4] sm:$0xf]
  %v89 = vld [vmem:[%s1 + $0xd8] sm:$0xf]
  %v90 = vld [vmem:[%s1 + $0xdc] sm:$0xf]
  %v91 = vld [vmem:[%s1 + $0xe0] sm:$0xf]
  %v92 = vld [vmem:[%s1 + $0xe4] sm:$0xf]
  %v93 = vld [vmem:[%s1 + $0xe8] sm:$0xf]
  %v94 = vld [vmem:[%s1 + $0xec] sm:$0xf]
  %v95 = vld [vmem:[%s1 + $0xf0] sm:$0xf]
  %v96 = vld [vmem:[%s1 + $0xf4] sm:$0xf]
  %v97 = vld [vmem:[%s1 + $0xf8] sm:$0xf]
  %v98 = vld [vmem:[%s1 + $0xfc] sm:$0xf]
  %v99 = vld [vmem:[%s1 + $0x100] sm:$0xf]
  %v100 = vld [vmem:[%s1 + $0x104] sm:$0xf]
  %v101 = vld [vmem:[%s1 + $0x108] sm:$0xf]
  %v102 = vld [vmem:[%s1 + $0x10c] sm:$0xf]
  %v103 = vld [vmem:[%s1 + $0x110] sm:$0xf]
  %v104 = vld [vmem:[%s1 + $0x114] sm:$0xf]
  %v105 = vld [vmem:[%s1 + $0x118] sm:$0xf]
  %v106 = vld [vmem:[%s1 + $0x11c] sm:$0xf]
  %v107 = vld [vmem:[%s1 + $0x120] sm:$0xf]
  %v108 = vld [vmem:[%s1 + $0x124] sm:$0xf]
  %v109 = vld [vmem:[%s1 + $0x128] sm:$0xf]
  %v110 = vld [vmem:[%s1 + $0x12c] sm:$0xf]
  %v111 = vld [vmem:[%s1 + $0x130] sm:$0xf]
  %v112 = vld [vmem:[%s1 + $0x134] sm:$0xf]
  %v113 = vld [vmem:[%s1 + $0x138] sm:$0xf]
  %v114 = vld [vmem:[%s1 + $0x13c] sm:$0xf]
  %v115 = vld [vmem:[%s1 + $0x140] sm:$0xf]
  %v116 = vld [vmem:[%s1 + $0x144] sm:$0xf]
  %v117 = vld [vmem:[%s1 + $0x148] sm:$0xf]
  %v118 = vld [vmem:[%s1 + $0x14c] sm:$0xf]
  %v119 = vld [vmem:[%s1 + $0x150] sm:$0xf]
  %v120 = vld [vmem:[%s1 + $0x154] sm:$0xf]
  %v121 = vld [vmem:[%s1 + $0x158] sm:$0xf]
  %v122 = vld [vmem:[%s1 + $0x15c] sm:$0xf]
  %v123 = vld [vmem:[%s1 + $0x160] sm:$0xf]
  %v124 = vld [vmem:[%s1 + $0x164] sm:$0xf]
  %v125 = vld [vmem:[%s1 + $0x168] sm:$0xf]
  %v126 = vld [vmem:[%s1 + $0x16c] sm:$0xf]
  %v127 = vld [vmem:[%s1 + $0x170] sm:$0xf]
  %v128 = vld [vmem:[%s1 + $0x174] sm:$0xf]
  %v129 = vld [vmem:[%s1 + $0x178] sm:$0xf]
  %v130 = vld [vmem:[%s1 + $0x17c] sm:$0xf]
  %v131 = vld [vmem:[%s1 + $0x180] sm:$0xf]
  %v132 = vld [vmem:[%s1 + $0x184] sm:$0xf]
  %v133 = vld [vmem:[%s1 + $0x188] sm:$0xf]
  %v134 = vld [vmem:[%s1 + $0x18c] sm:$0xf]
  %v135 = vld [vmem:[%s1 + $0x190] sm:$0xf]
  %v136 = vld [vmem:[%s1 + $0x194] sm:$0xf]
  %v137 = vld [vmem:[%s1 + $0x198] sm:$0xf]
  %v138 = vld [vmem:[%s1 + $0x19c] sm:$0xf]
  %v139 = vld [vmem:[%s1 + $0x1a0] sm:$0xf]
  %v140 = vld [vmem:[%s1 + $0x1a4] sm:$0xf]
  %v141 = vld [vmem:[%s1 + $0x1a8] sm:$0xf]
  %v142 = vld [vmem:[%s1 + $0x1ac] sm:$0xf]
  %v143 = vld [vmem:[%s1 + $0x1b0] sm:$0xf]
  %v144 = vld [vmem:[%s1 + $0x1b4] sm:$0xf]
  %v145 = vld [vmem:[%s1 + $0x1b8] sm:$0xf]
  %v146 = vld [vmem:[%s1 + $0x1bc] sm:$0xf]
  %v147 = vld [vmem:[%s1 + $0x1c0] sm:$0xf]
  %v148 = vld [vmem:[%s1 + $0x1c4] sm:$0xf]
  %v149 = vld [vmem:[%s1 + $0x1c8] sm:$0xf]
  %v150 = vld [vmem:[%s1 + $0x1cc] sm:$0xf]
  %v151 = vld [vmem:[%s1 + $0x1d0] sm:$0xf]
  %v152 = vld [vmem:[%s1 + $0x1d4] sm:$0xf]
  %v153 = vld [vmem:[%s1 + $0x1d8] sm:$0xf]
  %v154 = vld [vmem:[%s1 + $0x1dc] sm:$0xf]
  %v155 = vld [vmem:[%s1 + $0x1e0] sm:$0xf]
  %v156 = vld [vmem:[%s1 + $0x1e4] sm:$0xf]
  %v157 = vld [vmem:[%s1 + $0x1e8] sm:$0xf]
  %v158 = vld [vmem:[%s1 + $0x1ec] sm:$0xf]
  %v159 = vld [vmem:[%s1 + $0x1f0] sm:$0xf]
  %v160 = vld [vmem:[%s1 + $0x1f4] sm:$0xf]
  %v161 = vld [vmem:[%s1 + $0x1f8] sm:$0xf]
  %v162 = vld [vmem:[%s1 + $0x1fc] sm:$0xf]
  %v163 = vld [vmem:[%s1 + $0x200] sm:$0xf]
  %v164 = vld [vmem:[%s1 + $0x204] sm:$0xf]
  %v165 = vld [vmem:[%s1 + $0x208] sm:$0xf]
  %v166 = vld [vmem:[%s1 + $0x20c] sm:$0xf]
  %v167 = vld [vmem:[%s1 + $0x210] sm:$0xf]
  %v168 = vld [vmem:[%s1 + $0x214] sm:$0xf]
  %v169 = vld [vmem:[%s1 + $0x218] sm:$0xf]
  %v170 = vld [vmem:[%s1 + $0x21c] sm:$0xf]
  %v171 = vld [vmem:[%s1 + $0x220] sm:$0xf]
  %v172 = vld [vmem:[%s1 + $0x224] sm:$0xf]
  %v173 = vld [vmem:[%s1 + $0x228] sm:$0xf]
  %v174 = vld [vmem:[%s1 + $0x22c] sm:$0xf]
  %v175 = vld [vmem:[%s1 + $0x230] sm:$0xf]
  %v176 = vld [vmem:[%s1 + $0x234] sm:$0xf]
  %v177 = vld [vmem:[%s1 + $0x238] sm:$0xf]
  %v178 = vld [vmem:[%s1 + $0x23c] sm:$0xf]
  %v179 = vld [vmem:[%s1 + $0x240] sm:$0xf]
  %v180 = vld [vmem:[%s1 + $0x244] sm:$0xf]
  %v181 = vld [vmem:[%s1 + $0x248] sm:$0xf]
  %v182 = vld [vmem:[%s1 + $0x24c] sm:$0xf]
  %v183 = vld [vmem:[%s1 + $0x250] sm:$0xf]
  %v184 = vld [vmem:[%s1 + $0x254] sm:$0xf]
  %v185 = vld [vmem:[%s1 + $0x258] sm:$0xf]
  %v186 = vld [vmem:[%s1 + $0x25c] sm:$0xf]
  %v187 = vld [vmem:[%s1 + $0x260] sm:$0xf]
  %v188 = vld [vmem:[%s1 + $0x264] sm:$0xf]
  %v189 = vld [vmem:[%s1 + $0x268] sm:$0xf]
  %v190 = vld [vmem:[%s1 + $0x26c] sm:$0xf]
  %v191 = vld [vmem:[%s1 + $0x270] sm:$0xf]
  %v192 = vld [vmem:[%s1 + $0x274] sm:$0xf]
  %v193 = vld [vmem:[%s1 + $0x278] sm:$0xf]
  %v194 = vld [vmem:[%s1 + $0x27c] sm:$0xf]
  %v195 = vld [vmem:[%s1 + $0x280] sm:$0xf]
  %v196 = vld [vmem:[%s1 + $0x284] sm:$0xf]
  %v197 = vld [vmem:[%s1 + $0x288] sm:$0xf]
  %v198 = vld [vmem:[%s1 + $0x28c] sm:$0xf]
  %v199 = vld [vmem:[%s1 + $0x290] sm:$0xf]
  %v200 = vld [vmem:[%s1 + $0x294] sm:$0xf]
  %v201 = vld [vmem:[%s1 + $0x298] sm:$0xf]
  %v202 = vld [vmem:[%s1 + $0x29c] sm:$0xf]
  %v203 = vld [vmem:[%s1 + $0x2a0] sm:$0xf]
  %v204 = vld [vmem:[%s1 + $0x2a4] sm:$0xf]
  %v205 = vld [vmem:[%s1 + $0x2a8] sm:$0xf]
  %v206 = vld [vmem:[%s1 + $0x2ac] sm:$0xf]
  %v207 = vld [vmem:[%s1 + $0x2b0] sm:$0xf]
  %v208 = vld [vmem:[%s1 + $0x2b4] sm:$0xf]
  %v209 = vld [vmem:[%s1 + $0x2b8] sm:$0xf]
  %v210 = vld [vmem:[%s1 + $0x2bc] sm:$0xf]
  %v211 = vld [vmem:[%s1 + $0x2c0] sm:$0xf]
  %v212 = vld [vmem:[%s1 + $0x2c4] sm:$0xf]
  %v213 = vld [vmem:[%s1 + $0x2c8] sm:$0xf]
  %v214 = vld [vmem:[%s1 + $0x2cc] sm:$0xf]
  %v215 = vld [vmem:[%s1 + $0x2d0] sm:$0xf]
  %v216 = vld [vmem:[%s1 + $0x2d4] sm:$0xf]
  %v217 = vld [vmem:[%s1 + $0x2d8] sm:$0xf]
  %v218 = vld [vmem:[%s1 + $0x2dc] sm:$0xf]
  %v219 = vld [vmem:[%s1 + $0x2e0] sm:$0xf]
  %v220 = vld [vmem:[%s1 + $0x2e4] sm:$0xf]
  %v221 = vld [vmem:[%s1 + $0x2e8] sm:$0xf]
  %v222 = vld [vmem:[%s1 + $0x2ec] sm:$0xf]
  %v223 = vld [vmem:[%s1 + $0x2f0] sm:$0xf]
  %v224 = vld [vmem:[%s1 + $0x2f4] sm:$0xf]
  %v225 = vld [vmem:[%s1 + $0x2f8] sm:$0xf]
  %v226 = vld [vmem:[%s1 + $0x2fc] sm:$0xf]
  %v227 = vld [vmem:[%s1 + $0x300] sm:$0xf]
  %v228 = vld [vmem:[%s1 + $0x304] sm:$0xf]
  %v229 = vld [vmem:[%s1 + $0x308] sm:$0xf]
  %v230 = vld [vmem:[%s1 + $0x30c] sm:$0xf]
  %v231 = vld [vmem:[%s1 + $0x310] sm:$0xf]
  %v232 = vld [vmem:[%s1 + $0x314] sm:$0xf]
  %v233 = vld [vmem:[%s1 + $0x318] sm:$0xf]
  %v234 = vld [vmem:[%s1 + $0x31c] sm:$0xf]
  %v235 = vld [vmem:[%s1 + $0x320] sm:$0xf]
  %v236 = vld [vmem:[%s1 + $0x324] sm:$0xf]
  %v237 = vld [vmem:[%s1 + $0x328] sm:$0xf]
  %v238 = vld [vmem:[%s1 + $0x32c] sm:$0xf]
  %v239 = vld [vmem:[%s1 + $0x330] sm:$0xf]
  %v240 = vld [vmem:[%s1 + $0x334] sm:$0xf]
  %v241 = vld [vmem:[%s1 + $0x338] sm:$0xf]
  %v242 = vld [vmem:[%s1 + $0x33c] sm:$0xf]
  %v243 = vld [vmem:[%s1 + $0x340] sm:$0xf]
  %v244 = vld [vmem:[%s1 + $0x344] sm:$0xf]
  %v245 = vld [vmem:[%s1 + $0x348] sm:$0xf]
  %v246 = vld [vmem:[%s1 + $0x34c] sm:$0xf]
  %v247 = vld [vmem:[%s1 + $0x350] sm:$0xf]
  %v248 = vld [vmem:[%s1 + $0x354] sm:$0xf]
  %v249 = vld [vmem:[%s1 + $0x358] sm:$0xf]
  %v250 = vld [vmem:[%s1 + $0x35c] sm:$0xf]
  %v251 = vld [vmem:[%s1 + $0x360] sm:$0xf]
  %v252 = vld [vmem:[%s1 + $0x364] sm:$0xf]
  %v253 = vld [vmem:[%s1 + $0x368] sm:$0xf]
  %v254 = vld [vmem:[%s1 + $0x36c] sm:$0xf]
  %v255 = vld [vmem:[%s1 + $0x370] sm:$0xf]
  %v256 = vld [vmem:[%s1 + $0x374] sm:$0xf]
  %v257 = vld [vmem:[%s1 + $0x378] sm:$0xf]
  %v258 = vld [vmem:[%s1 + $0x37c] sm:$0xf]
  %v259 = vld [vmem:[%s1 + $0x380] sm:$0xf]
  %v260 = vld [vmem:[%s1 + $0x384] sm:$0xf]
  %v261 = vld [vmem:[%s1 + $0x388] sm:$0xf]
  %v262 = vld [vmem:[%s1 + $0x38c] sm:$0xf]
  %v263 = vld [vmem:[%s1 + $0x390] sm:$0xf]
  %v264 = vld [vmem:[%s1 + $0x394] sm:$0xf]
  %v265 = vld [vmem:[%s1 + $0x398] sm:$0xf]
  %v266 = vld [vmem:[%s1 + $0x39c] sm:$0xf]
  %v267 = vld [vmem:[%s1 + $0x3a0] sm:$0xf]
  %v268 = vld [vmem:[%s1 + $0x3a4] sm:$0xf]
  %v269 = vld [vmem:[%s1 + $0x3a8] sm:$0xf]
  %v270 = vld [vmem:[%s1 + $0x3ac] sm:$0xf]
  %v271 = vld [vmem:[%s1 + $0x3b0] sm:$0xf]
  %v272 = vld [vmem:[%s1 + $0x3b4] sm:$0xf]
  %v273 = vld [vmem:[%s1 + $0x3b8] sm:$0xf]
  %v274 = vld [vmem:[%s1 + $0x3bc] sm:$0xf]
  %v275 = vld [vmem:[%s1 + $0x3c0] sm:$0xf]
  %v276 = vld [vmem:[%s1 + $0x3c4] sm:$0xf]
  %v277 = vld [vmem:[%s1 + $0x3c8] sm:$0xf]
  %v278 = vld [vmem:[%s1 + $0x3cc] sm:$0xf]
  %v279 = vld [vmem:[%s1 + $0x3d0] sm:$0xf]
  %v280 = vld [vmem:[%s1 + $0x3d4] sm:$0xf]
  %v281 = vld [vmem:[%s1 + $0x3d8] sm:$0xf]
  %v282 = vld [vmem:[%s1 + $0x3dc] sm:$0xf]
  %v283 = vld [vmem:[%s1 + $0x3e0] sm:$0xf]
  %v284 = vld [vmem:[%s1 + $0x3e4] sm:$0xf]
  %v285 = vld [vmem:[%s1 + $0x3e8] sm:$0xf]
  %v286 = vld [vmem:[%s1 + $0x3ec] sm:$0xf]
  %v287 = vld [vmem:[%s1 + $0x3f0] sm:$0xf]
  %v288 = vld [vmem:[%s1 + $0x3f4] sm:$0xf]
  %v289 = vld [vmem:[%s1 + $0x3f8] sm:$0xf]
  %v290 = vld [vmem:[%s1 + $0x3fc] sm:$0xf]
  %v291 = vld [vmem:[%s2] sm:$0x1]
  %v293 = vlaneseq
  %v294 = vshrl.u32 %v293, 7
  %v295 = vsub.s32 0, %v294
  %v296 = vrot.slane %v291, %v295
  %v306 = vunpack.c.l.b16 %v27
  %v307 = vunpack.c.h.b16 %v27
  %v308 = vunpack.c.l.b16 %v28
  %v309 = vunpack.c.h.b16 %v28
  %v310 = vunpack.c.l.b16 %v29
  %v311 = vunpack.c.h.b16 %v29
  %v312 = vunpack.c.l.b16 %v30
  %v313 = vunpack.c.h.b16 %v30
  %v314 = vunpack.c.l.b16 %v31
  %v315 = vunpack.c.h.b16 %v31
  %v316 = vunpack.c.l.b16 %v32
  %v317 = vunpack.c.h.b16 %v32
  %v318 = vunpack.c.l.b16 %v33
  %v319 = vunpack.c.h.b16 %v33
  %v320 = vunpack.c.l.b16 %v34
  %v321 = vunpack.c.h.b16 %v34
  %v322 = vpack.c.b16 %v306, %v306
  %v323 = vpack.c.b16 %v307, %v307
  %v324 = vpack.c.b16 %v308, %v308
  %v325 = vpack.c.b16 %v309, %v309
  %v326 = vpack.c.b16 %v310, %v310
  %v327 = vpack.c.b16 %v311, %v311
  %v328 = vpack.c.b16 %v312, %v312
  %v329 = vpack.c.b16 %v313, %v313
  %v330 = vpack.c.b16 %v314, %v314
  %v331 = vpack.c.b16 %v315, %v315
  %v332 = vpack.c.b16 %v316, %v316
  %v333 = vpack.c.b16 %v317, %v317
  %v334 = vpack.c.b16 %v318, %v318
  %v335 = vpack.c.b16 %v319, %v319
  %v336 = vpack.c.b16 %v320, %v320
  %v337 = vpack.c.b16 %v321, %v321
  %v610 = vunpack.c.l.b16 %v35
  %v611 = vunpack.c.l.b16 %v36
  %v612 = vunpack.c.l.b16 %v37
  %v613 = vunpack.c.l.b16 %v38
  %v614 = vunpack.c.l.b16 %v39
  %v615 = vunpack.c.l.b16 %v40
  %v616 = vunpack.c.l.b16 %v41
  %v617 = vunpack.c.l.b16 %v42
  %v618 = vunpack.c.l.b16 %v43
  %v619 = vunpack.c.l.b16 %v44
  %v620 = vunpack.c.l.b16 %v45
  %v621 = vunpack.c.l.b16 %v46
  %v622 = vunpack.c.l.b16 %v47
  %v623 = vunpack.c.l.b16 %v48
  %v624 = vunpack.c.l.b16 %v49
  %v625 = vunpack.c.l.b16 %v50
  %v626 = vunpack.c.l.b16 %v51
  %v627 = vunpack.c.l.b16 %v52
  %v628 = vunpack.c.l.b16 %v53
  %v629 = vunpack.c.l.b16 %v54
  %v630 = vunpack.c.l.b16 %v55
  %v631 = vunpack.c.l.b16 %v56
  %v632 = vunpack.c.l.b16 %v57
  %v633 = vunpack.c.l.b16 %v58
  %v634 = vunpack.c.l.b16 %v59
  %v635 = vunpack.c.l.b16 %v60
  %v636 = vunpack.c.l.b16 %v61
  %v637 = vunpack.c.l.b16 %v62
  %v638 = vunpack.c.l.b16 %v63
  %v639 = vunpack.c.l.b16 %v64
  %v640 = vunpack.c.l.b16 %v65
  %v641 = vunpack.c.l.b16 %v66
  %v642 = vunpack.c.l.b16 %v67
  %v643 = vunpack.c.l.b16 %v68
  %v644 = vunpack.c.l.b16 %v69
  %v645 = vunpack.c.l.b16 %v70
  %v646 = vunpack.c.l.b16 %v71
  %v647 = vunpack.c.l.b16 %v72
  %v648 = vunpack.c.l.b16 %v73
  %v649 = vunpack.c.l.b16 %v74
  %v650 = vunpack.c.l.b16 %v75
  %v651 = vunpack.c.l.b16 %v76
  %v652 = vunpack.c.l.b16 %v77
  %v653 = vunpack.c.l.b16 %v78
  %v654 = vunpack.c.l.b16 %v79
  %v655 = vunpack.c.l.b16 %v80
  %v656 = vunpack.c.l.b16 %v81
  %v657 = vunpack.c.l.b16 %v82
  %v658 = vunpack.c.l.b16 %v83
  %v659 = vunpack.c.l.b16 %v84
  %v660 = vunpack.c.l.b16 %v85
  %v661 = vunpack.c.l.b16 %v86
  %v662 = vunpack.c.l.b16 %v87
  %v663 = vunpack.c.l.b16 %v88
  %v664 = vunpack.c.l.b16 %v89
  %v665 = vunpack.c.l.b16 %v90
  %v666 = vunpack.c.l.b16 %v91
  %v667 = vunpack.c.l.b16 %v92
  %v668 = vunpack.c.l.b16 %v93
  %v669 = vunpack.c.l.b16 %v94
  %v670 = vunpack.c.l.b16 %v95
  %v671 = vunpack.c.l.b16 %v96
  %v672 = vunpack.c.l.b16 %v97
  %v673 = vunpack.c.l.b16 %v98
  %v674 = vunpack.c.l.b16 %v99
  %v675 = vunpack.c.l.b16 %v100
  %v676 = vunpack.c.l.b16 %v101
  %v677 = vunpack.c.l.b16 %v102
  %v678 = vunpack.c.l.b16 %v103
  %v679 = vunpack.c.l.b16 %v104
  %v680 = vunpack.c.l.b16 %v105
  %v681 = vunpack.c.l.b16 %v106
  %v682 = vunpack.c.l.b16 %v107
  %v683 = vunpack.c.l.b16 %v108
  %v684 = vunpack.c.l.b16 %v109
  %v685 = vunpack.c.l.b16 %v110
  %v686 = vunpack.c.l.b16 %v111
  %v687 = vunpack.c.l.b16 %v112
  %v688 = vunpack.c.l.b16 %v113
  %v689 = vunpack.c.l.b16 %v114
  %v690 = vunpack.c.l.b16 %v115
  %v691 = vunpack.c.l.b16 %v116
  %v692 = vunpack.c.l.b16 %v117
  %v693 = vunpack.c.l.b16 %v118
  %v694 = vunpack.c.l.b16 %v119
  %v695 = vunpack.c.l.b16 %v120
  %v696 = vunpack.c.l.b16 %v121
  %v697 = vunpack.c.l.b16 %v122
  %v698 = vunpack.c.l.b16 %v123
  %v699 = vunpack.c.l.b16 %v124
  %v700 = vunpack.c.l.b16 %v125
  %v701 = vunpack.c.l.b16 %v126
  %v702 = vunpack.c.l.b16 %v127
  %v703 = vunpack.c.l.b16 %v128
  %v704 = vunpack.c.l.b16 %v129
  %v705 = vunpack.c.l.b16 %v130
  %v706 = vunpack.c.l.b16 %v131
  %v707 = vunpack.c.l.b16 %v132
  %v708 = vunpack.c.l.b16 %v133
  %v709 = vunpack.c.l.b16 %v134
  %v710 = vunpack.c.l.b16 %v135
  %v711 = vunpack.c.l.b16 %v136
  %v712 = vunpack.c.l.b16 %v137
  %v713 = vunpack.c.l.b16 %v138
  %v714 = vunpack.c.l.b16 %v139
  %v715 = vunpack.c.l.b16 %v140
  %v716 = vunpack.c.l.b16 %v141
  %v717 = vunpack.c.l.b16 %v142
  %v718 = vunpack.c.l.b16 %v143
  %v719 = vunpack.c.l.b16 %v144
  %v720 = vunpack.c.l.b16 %v145
  %v721 = vunpack.c.l.b16 %v146
  %v722 = vunpack.c.l.b16 %v147
  %v723 = vunpack.c.l.b16 %v148
  %v724 = vunpack.c.l.b16 %v149
  %v725 = vunpack.c.l.b16 %v150
  %v726 = vunpack.c.l.b16 %v151
  %v727 = vunpack.c.l.b16 %v152
  %v728 = vunpack.c.l.b16 %v153
  %v729 = vunpack.c.l.b16 %v154
  %v730 = vunpack.c.l.b16 %v155
  %v731 = vunpack.c.l.b16 %v156
  %v732 = vunpack.c.l.b16 %v157
  %v733 = vunpack.c.l.b16 %v158
  %v734 = vunpack.c.l.b16 %v159
  %v735 = vunpack.c.l.b16 %v160
  %v736 = vunpack.c.l.b16 %v161
  %v737 = vunpack.c.l.b16 %v162
  %v738 = vunpack.c.l.b16 %v163
  %v739 = vunpack.c.l.b16 %v164
  %v740 = vunpack.c.l.b16 %v165
  %v741 = vunpack.c.l.b16 %v166
  %v742 = vunpack.c.l.b16 %v167
  %v743 = vunpack.c.l.b16 %v168
  %v744 = vunpack.c.l.b16 %v169
  %v745 = vunpack.c.l.b16 %v170
  %v746 = vunpack.c.l.b16 %v171
  %v747 = vunpack.c.l.b16 %v172
  %v748 = vunpack.c.l.b16 %v173
  %v749 = vunpack.c.l.b16 %v174
  %v750 = vunpack.c.l.b16 %v175
  %v751 = vunpack.c.l.b16 %v176
  %v752 = vunpack.c.l.b16 %v177
  %v753 = vunpack.c.l.b16 %v178
  %v754 = vunpack.c.l.b16 %v179
  %v755 = vunpack.c.l.b16 %v180
  %v756 = vunpack.c.l.b16 %v181
  %v757 = vunpack.c.l.b16 %v182
  %v758 = vunpack.c.l.b16 %v183
  %v759 = vunpack.c.l.b16 %v184
  %v760 = vunpack.c.l.b16 %v185
  %v761 = vunpack.c.l.b16 %v186
  %v762 = vunpack.c.l.b16 %v187
  %v763 = vunpack.c.l.b16 %v188
  %v764 = vunpack.c.l.b16 %v189
  %v765 = vunpack.c.l.b16 %v190
  %v766 = vunpack.c.l.b16 %v191
  %v767 = vunpack.c.l.b16 %v192
  %v768 = vunpack.c.l.b16 %v193
  %v769 = vunpack.c.l.b16 %v194
  %v770 = vunpack.c.l.b16 %v195
  %v771 = vunpack.c.l.b16 %v196
  %v772 = vunpack.c.l.b16 %v197
  %v773 = vunpack.c.l.b16 %v198
  %v774 = vunpack.c.l.b16 %v199
  %v775 = vunpack.c.l.b16 %v200
  %v776 = vunpack.c.l.b16 %v201
  %v777 = vunpack.c.l.b16 %v202
  %v778 = vunpack.c.l.b16 %v203
  %v779 = vunpack.c.l.b16 %v204
  %v780 = vunpack.c.l.b16 %v205
  %v781 = vunpack.c.l.b16 %v206
  %v782 = vunpack.c.l.b16 %v207
  %v783 = vunpack.c.l.b16 %v208
  %v784 = vunpack.c.l.b16 %v209
  %v785 = vunpack.c.l.b16 %v210
  %v786 = vunpack.c.l.b16 %v211
  %v787 = vunpack.c.l.b16 %v212
  %v788 = vunpack.c.l.b16 %v213
  %v789 = vunpack.c.l.b16 %v214
  %v790 = vunpack.c.l.b16 %v215
  %v791 = vunpack.c.l.b16 %v216
  %v792 = vunpack.c.l.b16 %v217
  %v793 = vunpack.c.l.b16 %v218
  %v794 = vunpack.c.l.b16 %v219
  %v795 = vunpack.c.l.b16 %v220
  %v796 = vunpack.c.l.b16 %v221
  %v797 = vunpack.c.l.b16 %v222
  %v798 = vunpack.c.l.b16 %v223
  %v799 = vunpack.c.l.b16 %v224
  %v800 = vunpack.c.l.b16 %v225
  %v801 = vunpack.c.l.b16 %v226
  %v802 = vunpack.c.l.b16 %v227
  %v803 = vunpack.c.l.b16 %v228
  %v804 = vunpack.c.l.b16 %v229
  %v805 = vunpack.c.l.b16 %v230
  %v806 = vunpack.c.l.b16 %v231
  %v807 = vunpack.c.l.b16 %v232
  %v808 = vunpack.c.l.b16 %v233
  %v809 = vunpack.c.l.b16 %v234
  %v810 = vunpack.c.l.b16 %v235
  %v811 = vunpack.c.l.b16 %v236
  %v812 = vunpack.c.l.b16 %v237
  %v813 = vunpack.c.l.b16 %v238
  %v814 = vunpack.c.l.b16 %v239
  %v815 = vunpack.c.l.b16 %v240
  %v816 = vunpack.c.l.b16 %v241
  %v817 = vunpack.c.l.b16 %v242
  %v818 = vunpack.c.l.b16 %v243
  %v819 = vunpack.c.l.b16 %v244
  %v820 = vunpack.c.l.b16 %v245
  %v821 = vunpack.c.l.b16 %v246
  %v822 = vunpack.c.l.b16 %v247
  %v823 = vunpack.c.l.b16 %v248
  %v824 = vunpack.c.l.b16 %v249
  %v825 = vunpack.c.l.b16 %v250
  %v826 = vunpack.c.l.b16 %v251
  %v827 = vunpack.c.l.b16 %v252
  %v828 = vunpack.c.l.b16 %v253
  %v829 = vunpack.c.l.b16 %v254
  %v830 = vunpack.c.l.b16 %v255
  %v831 = vunpack.c.l.b16 %v256
  %v832 = vunpack.c.l.b16 %v257
  %v833 = vunpack.c.l.b16 %v258
  %v834 = vunpack.c.l.b16 %v259
  %v835 = vunpack.c.l.b16 %v260
  %v836 = vunpack.c.l.b16 %v261
  %v837 = vunpack.c.l.b16 %v262
  %v838 = vunpack.c.l.b16 %v263
  %v839 = vunpack.c.l.b16 %v264
  %v840 = vunpack.c.l.b16 %v265
  %v841 = vunpack.c.l.b16 %v266
  %v842 = vunpack.c.l.b16 %v267
  %v843 = vunpack.c.l.b16 %v268
  %v844 = vunpack.c.l.b16 %v269
  %v845 = vunpack.c.l.b16 %v270
  %v846 = vunpack.c.l.b16 %v271
  %v847 = vunpack.c.l.b16 %v272
  %v848 = vunpack.c.l.b16 %v273
  %v849 = vunpack.c.l.b16 %v274
  %v850 = vunpack.c.l.b16 %v275
  %v851 = vunpack.c.l.b16 %v276
  %v852 = vunpack.c.l.b16 %v277
  %v853 = vunpack.c.l.b16 %v278
  %v854 = vunpack.c.l.b16 %v279
  %v855 = vunpack.c.l.b16 %v280
  %v856 = vunpack.c.l.b16 %v281
  %v857 = vunpack.c.l.b16 %v282
  %v858 = vunpack.c.l.b16 %v283
  %v859 = vunpack.c.l.b16 %v284
  %v860 = vunpack.c.l.b16 %v285
  %v861 = vunpack.c.l.b16 %v286
  %v862 = vunpack.c.l.b16 %v287
  %v863 = vunpack.c.l.b16 %v288
  %v864 = vunpack.c.l.b16 %v289
  %v865 = vunpack.c.l.b16 %v290
  %v866 = vpack.c.b16 %v611, %v610
  %v867 = vpack.c.b16 %v613, %v612
  %v868 = vpack.c.b16 %v615, %v614
  %v869 = vpack.c.b16 %v617, %v616
  %v870 = vpack.c.b16 %v619, %v618
  %v871 = vpack.c.b16 %v621, %v620
  %v872 = vpack.c.b16 %v623, %v622
  %v873 = vpack.c.b16 %v625, %v624
  %v874 = vpack.c.b16 %v627, %v626
  %v875 = vpack.c.b16 %v629, %v628
  %v876 = vpack.c.b16 %v631, %v630
  %v877 = vpack.c.b16 %v633, %v632
  %v878 = vpack.c.b16 %v635, %v634
  %v879 = vpack.c.b16 %v637, %v636
  %v880 = vpack.c.b16 %v639, %v638
  %v881 = vpack.c.b16 %v641, %v640
  %v882 = vpack.c.b16 %v643, %v642
  %v883 = vpack.c.b16 %v645, %v644
  %v884 = vpack.c.b16 %v647, %v646
  %v885 = vpack.c.b16 %v649, %v648
  %v886 = vpack.c.b16 %v651, %v650
  %v887 = vpack.c.b16 %v653, %v652
  %v888 = vpack.c.b16 %v655, %v654
  %v889 = vpack.c.b16 %v657, %v656
  %v890 = vpack.c.b16 %v659, %v658
  %v891 = vpack.c.b16 %v661, %v660
  %v892 = vpack.c.b16 %v663, %v662
  %v893 = vpack.c.b16 %v665, %v664
  %v894 = vpack.c.b16 %v667, %v666
  %v895 = vpack.c.b16 %v669, %v668
  %v896 = vpack.c.b16 %v671, %v670
  %v897 = vpack.c.b16 %v673, %v672
  %v898 = vpack.c.b16 %v675, %v674
  %v899 = vpack.c.b16 %v677, %v676
  %v900 = vpack.c.b16 %v679, %v678
  %v901 = vpack.c.b16 %v681, %v680
  %v902 = vpack.c.b16 %v683, %v682
  %v903 = vpack.c.b16 %v685, %v684
  %v904 = vpack.c.b16 %v687, %v686
  %v905 = vpack.c.b16 %v689, %v688
  %v906 = vpack.c.b16 %v691, %v690
  %v907 = vpack.c.b16 %v693, %v692
  %v908 = vpack.c.b16 %v695, %v694
  %v909 = vpack.c.b16 %v697, %v696
  %v910 = vpack.c.b16 %v699, %v698
  %v911 = vpack.c.b16 %v701, %v700
  %v912 = vpack.c.b16 %v703, %v702
  %v913 = vpack.c.b16 %v705, %v704
  %v914 = vpack.c.b16 %v707, %v706
  %v915 = vpack.c.b16 %v709, %v708
  %v916 = vpack.c.b16 %v711, %v710
  %v917 = vpack.c.b16 %v713, %v712
  %v918 = vpack.c.b16 %v715, %v714
  %v919 = vpack.c.b16 %v717, %v716
  %v920 = vpack.c.b16 %v719, %v718
  %v921 = vpack.c.b16 %v721, %v720
  %v922 = vpack.c.b16 %v723, %v722
  %v923 = vpack.c.b16 %v725, %v724
  %v924 = vpack.c.b16 %v727, %v726
  %v925 = vpack.c.b16 %v729, %v728
  %v926 = vpack.c.b16 %v731, %v730
  %v927 = vpack.c.b16 %v733, %v732
  %v928 = vpack.c.b16 %v735, %v734
  %v929 = vpack.c.b16 %v737, %v736
  %v930 = vpack.c.b16 %v739, %v738
  %v931 = vpack.c.b16 %v741, %v740
  %v932 = vpack.c.b16 %v743, %v742
  %v933 = vpack.c.b16 %v745, %v744
  %v934 = vpack.c.b16 %v747, %v746
  %v935 = vpack.c.b16 %v749, %v748
  %v936 = vpack.c.b16 %v751, %v750
  %v937 = vpack.c.b16 %v753, %v752
  %v938 = vpack.c.b16 %v755, %v754
  %v939 = vpack.c.b16 %v757, %v756
  %v940 = vpack.c.b16 %v759, %v758
  %v941 = vpack.c.b16 %v761, %v760
  %v942 = vpack.c.b16 %v763, %v762
  %v943 = vpack.c.b16 %v765, %v764
  %v944 = vpack.c.b16 %v767, %v766
  %v945 = vpack.c.b16 %v769, %v768
  %v946 = vpack.c.b16 %v771, %v770
  %v947 = vpack.c.b16 %v773, %v772
  %v948 = vpack.c.b16 %v775, %v774
  %v949 = vpack.c.b16 %v777, %v776
  %v950 = vpack.c.b16 %v779, %v778
  %v951 = vpack.c.b16 %v781, %v780
  %v952 = vpack.c.b16 %v783, %v782
  %v953 = vpack.c.b16 %v785, %v784
  %v954 = vpack.c.b16 %v787, %v786
  %v955 = vpack.c.b16 %v789, %v788
  %v956 = vpack.c.b16 %v791, %v790
  %v957 = vpack.c.b16 %v793, %v792
  %v958 = vpack.c.b16 %v795, %v794
  %v959 = vpack.c.b16 %v797, %v796
  %v960 = vpack.c.b16 %v799, %v798
  %v961 = vpack.c.b16 %v801, %v800
  %v962 = vpack.c.b16 %v803, %v802
  %v963 = vpack.c.b16 %v805, %v804
  %v964 = vpack.c.b16 %v807, %v806
  %v965 = vpack.c.b16 %v809, %v808
  %v966 = vpack.c.b16 %v811, %v810
  %v967 = vpack.c.b16 %v813, %v812
  %v968 = vpack.c.b16 %v815, %v814
  %v969 = vpack.c.b16 %v817, %v816
  %v970 = vpack.c.b16 %v819, %v818
  %v971 = vpack.c.b16 %v821, %v820
  %v972 = vpack.c.b16 %v823, %v822
  %v973 = vpack.c.b16 %v825, %v824
  %v974 = vpack.c.b16 %v827, %v826
  %v975 = vpack.c.b16 %v829, %v828
  %v976 = vpack.c.b16 %v831, %v830
  %v977 = vpack.c.b16 %v833, %v832
  %v978 = vpack.c.b16 %v835, %v834
  %v979 = vpack.c.b16 %v837, %v836
  %v980 = vpack.c.b16 %v839, %v838
  %v981 = vpack.c.b16 %v841, %v840
  %v982 = vpack.c.b16 %v843, %v842
  %v983 = vpack.c.b16 %v845, %v844
  %v984 = vpack.c.b16 %v847, %v846
  %v985 = vpack.c.b16 %v849, %v848
  %v986 = vpack.c.b16 %v851, %v850
  %v987 = vpack.c.b16 %v853, %v852
  %v988 = vpack.c.b16 %v855, %v854
  %v989 = vpack.c.b16 %v857, %v856
  %v990 = vpack.c.b16 %v859, %v858
  %v991 = vpack.c.b16 %v861, %v860
  %v992 = vpack.c.b16 %v863, %v862
  %v993 = vpack.c.b16 %v865, %v864
  %1122 = vmatprep.subr.bf16.mxu0 0
  %1123 = vmatpush1.bf16.msra.mxu0 %v866
  %1124 = vmatprep.subr.bf16.mxu0 0
  %1125 = vmatpush1.bf16.msra.mxu0 %v867
  %1126 = vmatprep.subr.bf16.mxu0 0
  %1127 = vmatpush1.bf16.msra.mxu0 %v868
  %1128 = vmatprep.subr.bf16.mxu0 0
  %1129 = vmatpush1.bf16.msra.mxu0 %v869
  %1130 = vmatprep.subr.bf16.mxu0 0
  %1131 = vmatpush1.bf16.msra.mxu0 %v870
  %1132 = vmatprep.subr.bf16.mxu0 0
  %1133 = vmatpush1.bf16.msra.mxu0 %v871
  %1134 = vmatprep.subr.bf16.mxu0 0
  %1135 = vmatpush1.bf16.msra.mxu0 %v872
  %1136 = vmatprep.subr.bf16.mxu0 0
  %1137 = vmatpush1.bf16.msra.mxu0 %v873
  %1138 = vmatprep.subr.bf16.mxu0 0
  %1139 = vmatpush1.bf16.msra.mxu0 %v874
  %1140 = vmatprep.subr.bf16.mxu0 0
  %1141 = vmatpush1.bf16.msra.mxu0 %v875
  %1142 = vmatprep.subr.bf16.mxu0 0
  %1143 = vmatpush1.bf16.msra.mxu0 %v876
  %1144 = vmatprep.subr.bf16.mxu0 0
  %1145 = vmatpush1.bf16.msra.mxu0 %v877
  %1146 = vmatprep.subr.bf16.mxu0 0
  %1147 = vmatpush1.bf16.msra.mxu0 %v878
  %1148 = vmatprep.subr.bf16.mxu0 0
  %1149 = vmatpush1.bf16.msra.mxu0 %v879
  %1150 = vmatprep.subr.bf16.mxu0 0
  %1151 = vmatpush1.bf16.msra.mxu0 %v880
  %1152 = vmatprep.subr.bf16.mxu0 0
  %1153 = vmatpush1.bf16.msra.mxu0 %v881
  %1154 = vmatprep.mubr.bf16.mxu0 %v323
  %1155 = vmatmul.mubr.bf16.gmra.mrb[0].mxu0 %v322
  %v1156 = vpop.f32.mrb[0].mxu0
  %v1157 = vadd.f32 %v296, %v1156
  %v1158 = vpop.f32.mrb[0].mxu0
  %v1159 = vpop.f32.mrb[0].mxu0
  %v1160 = vpop.f32.mrb[0].mxu0
  %1161 = vdwg.mxu0
  %1162 = vmatprep.subr.bf16.mxu0 0
  %1163 = vmatpush1.bf16.msra.mxu0 %v882
  %1164 = vmatprep.subr.bf16.mxu0 0
  %1165 = vmatpush1.bf16.msra.mxu0 %v883
  %1166 = vmatprep.subr.bf16.mxu0 0
  %1167 = vmatpush1.bf16.msra.mxu0 %v884
  %1168 = vmatprep.subr.bf16.mxu0 0
  %1169 = vmatpush1.bf16.msra.mxu0 %v885
  %1170 = vmatprep.subr.bf16.mxu0 0
  %1171 = vmatpush1.bf16.msra.mxu0 %v886
  %1172 = vmatprep.subr.bf16.mxu0 0
  %1173 = vmatpush1.bf16.msra.mxu0 %v887
  %1174 = vmatprep.subr.bf16.mxu0 0
  %1175 = vmatpush1.bf16.msra.mxu0 %v888
  %1176 = vmatprep.subr.bf16.mxu0 0
  %1177 = vmatpush1.bf16.msra.mxu0 %v889
  %1178 = vmatprep.subr.bf16.mxu0 0
  %1179 = vmatpush1.bf16.msra.mxu0 %v890
  %1180 = vmatprep.subr.bf16.mxu0 0
  %1181 = vmatpush1.bf16.msra.mxu0 %v891
  %1182 = vmatprep.subr.bf16.mxu0 0
  %1183 = vmatpush1.bf16.msra.mxu0 %v892
  %1184 = vmatprep.subr.bf16.mxu0 0
  %1185 = vmatpush1.bf16.msra.mxu0 %v893
  %1186 = vmatprep.subr.bf16.mxu0 0
  %1187 = vmatpush1.bf16.msra.mxu0 %v894
  %1188 = vmatprep.subr.bf16.mxu0 0
  %1189 = vmatpush1.bf16.msra.mxu0 %v895
  %1190 = vmatprep.subr.bf16.mxu0 0
  %1191 = vmatpush1.bf16.msra.mxu0 %v896
  %1192 = vmatprep.subr.bf16.mxu0 0
  %1193 = vmatpush1.bf16.msra.mxu0 %v897
  %1194 = vmatprep.mubr.bf16.mxu0 %v325
  %1195 = vmatmul.mubr.bf16.gmra.mrb[0].mxu0 %v324
  %v1196 = vpop.f32.mrb[0].mxu0
  %v1197 = vadd.f32 %v1157, %v1196
  %v1198 = vpop.f32.mrb[0].mxu0
  %v1199 = vpop.f32.mrb[0].mxu0
  %v1200 = vpop.f32.mrb[0].mxu0
  %1201 = vdwg.mxu0
  %1202 = vmatprep.subr.bf16.mxu0 0
  %1203 = vmatpush1.bf16.msra.mxu0 %v898
  %1204 = vmatprep.subr.bf16.mxu0 0
  %1205 = vmatpush1.bf16.msra.mxu0 %v899
  %1206 = vmatprep.subr.bf16.mxu0 0
  %1207 = vmatpush1.bf16.msra.mxu0 %v900
  %1208 = vmatprep.subr.bf16.mxu0 0
  %1209 = vmatpush1.bf16.msra.mxu0 %v901
  %1210 = vmatprep.subr.bf16.mxu0 0
  %1211 = vmatpush1.bf16.msra.mxu0 %v902
  %1212 = vmatprep.subr.bf16.mxu0 0
  %1213 = vmatpush1.bf16.msra.mxu0 %v903
  %1214 = vmatprep.subr.bf16.mxu0 0
  %1215 = vmatpush1.bf16.msra.mxu0 %v904
  %1216 = vmatprep.subr.bf16.mxu0 0
  %1217 = vmatpush1.bf16.msra.mxu0 %v905
  %1218 = vmatprep.subr.bf16.mxu0 0
  %1219 = vmatpush1.bf16.msra.mxu0 %v906
  %1220 = vmatprep.subr.bf16.mxu0 0
  %1221 = vmatpush1.bf16.msra.mxu0 %v907
  %1222 = vmatprep.subr.bf16.mxu0 0
  %1223 = vmatpush1.bf16.msra.mxu0 %v908
  %1224 = vmatprep.subr.bf16.mxu0 0
  %1225 = vmatpush1.bf16.msra.mxu0 %v909
  %1226 = vmatprep.subr.bf16.mxu0 0
  %1227 = vmatpush1.bf16.msra.mxu0 %v910
  %1228 = vmatprep.subr.bf16.mxu0 0
  %1229 = vmatpush1.bf16.msra.mxu0 %v911
  %1230 = vmatprep.subr.bf16.mxu0 0
  %1231 = vmatpush1.bf16.msra.mxu0 %v912
  %1232 = vmatprep.subr.bf16.mxu0 0
  %1233 = vmatpush1.bf16.msra.mxu0 %v913
  %1234 = vmatprep.mubr.bf16.mxu0 %v327
  %1235 = vmatmul.mubr.bf16.gmra.mrb[0].mxu0 %v326
  %v1236 = vpop.f32.mrb[0].mxu0
  %v1237 = vadd.f32 %v1197, %v1236
  %v1238 = vpop.f32.mrb[0].mxu0
  %v1239 = vpop.f32.mrb[0].mxu0
  %v1240 = vpop.f32.mrb[0].mxu0
  %1241 = vdwg.mxu0
  %1242 = vmatprep.subr.bf16.mxu0 0
  %1243 = vmatpush1.bf16.msra.mxu0 %v914
  %1244 = vmatprep.subr.bf16.mxu0 0
  %1245 = vmatpush1.bf16.msra.mxu0 %v915
  %1246 = vmatprep.subr.bf16.mxu0 0
  %1247 = vmatpush1.bf16.msra.mxu0 %v916
  %1248 = vmatprep.subr.bf16.mxu0 0
  %1249 = vmatpush1.bf16.msra.mxu0 %v917
  %1250 = vmatprep.subr.bf16.mxu0 0
  %1251 = vmatpush1.bf16.msra.mxu0 %v918
  %1252 = vmatprep.subr.bf16.mxu0 0
  %1253 = vmatpush1.bf16.msra.mxu0 %v919
  %1254 = vmatprep.subr.bf16.mxu0 0
  %1255 = vmatpush1.bf16.msra.mxu0 %v920
  %1256 = vmatprep.subr.bf16.mxu0 0
  %1257 = vmatpush1.bf16.msra.mxu0 %v921
  %1258 = vmatprep.subr.bf16.mxu0 0
  %1259 = vmatpush1.bf16.msra.mxu0 %v922
  %1260 = vmatprep.subr.bf16.mxu0 0
  %1261 = vmatpush1.bf16.msra.mxu0 %v923
  %1262 = vmatprep.subr.bf16.mxu0 0
  %1263 = vmatpush1.bf16.msra.mxu0 %v924
  %1264 = vmatprep.subr.bf16.mxu0 0
  %1265 = vmatpush1.bf16.msra.mxu0 %v925
  %1266 = vmatprep.subr.bf16.mxu0 0
  %1267 = vmatpush1.bf16.msra.mxu0 %v926
  %1268 = vmatprep.subr.bf16.mxu0 0
  %1269 = vmatpush1.bf16.msra.mxu0 %v927
  %1270 = vmatprep.subr.bf16.mxu0 0
  %1271 = vmatpush1.bf16.msra.mxu0 %v928
  %1272 = vmatprep.subr.bf16.mxu0 0
  %1273 = vmatpush1.bf16.msra.mxu0 %v929
  %1274 = vmatprep.mubr.bf16.mxu0 %v329
  %1275 = vmatmul.mubr.bf16.gmra.mrb[0].mxu0 %v328
  %v1276 = vpop.f32.mrb[0].mxu0
  %v1277 = vadd.f32 %v1237, %v1276
  %v1278 = vpop.f32.mrb[0].mxu0
  %v1279 = vpop.f32.mrb[0].mxu0
  %v1280 = vpop.f32.mrb[0].mxu0
  %1281 = vdwg.mxu0
  %1282 = vmatprep.subr.bf16.mxu0 0
  %1283 = vmatpush1.bf16.msra.mxu0 %v930
  %1284 = vmatprep.subr.bf16.mxu0 0
  %1285 = vmatpush1.bf16.msra.mxu0 %v931
  %1286 = vmatprep.subr.bf16.mxu0 0
  %1287 = vmatpush1.bf16.msra.mxu0 %v932
  %1288 = vmatprep.subr.bf16.mxu0 0
  %1289 = vmatpush1.bf16.msra.mxu0 %v933
  %1290 = vmatprep.subr.bf16.mxu0 0
  %1291 = vmatpush1.bf16.msra.mxu0 %v934
  %1292 = vmatprep.subr.bf16.mxu0 0
  %1293 = vmatpush1.bf16.msra.mxu0 %v935
  %1294 = vmatprep.subr.bf16.mxu0 0
  %1295 = vmatpush1.bf16.msra.mxu0 %v936
  %1296 = vmatprep.subr.bf16.mxu0 0
  %1297 = vmatpush1.bf16.msra.mxu0 %v937
  %1298 = vmatprep.subr.bf16.mxu0 0
  %1299 = vmatpush1.bf16.msra.mxu0 %v938
  %1300 = vmatprep.subr.bf16.mxu0 0
  %1301 = vmatpush1.bf16.msra.mxu0 %v939
  %1302 = vmatprep.subr.bf16.mxu0 0
  %1303 = vmatpush1.bf16.msra.mxu0 %v940
  %1304 = vmatprep.subr.bf16.mxu0 0
  %1305 = vmatpush1.bf16.msra.mxu0 %v941
  %1306 = vmatprep.subr.bf16.mxu0 0
  %1307 = vmatpush1.bf16.msra.mxu0 %v942
  %1308 = vmatprep.subr.bf16.mxu0 0
  %1309 = vmatpush1.bf16.msra.mxu0 %v943
  %1310 = vmatprep.subr.bf16.mxu0 0
  %1311 = vmatpush1.bf16.msra.mxu0 %v944
  %1312 = vmatprep.subr.bf16.mxu0 0
  %1313 = vmatpush1.bf16.msra.mxu0 %v945
  %1314 = vmatprep.mubr.bf16.mxu0 %v331
  %1315 = vmatmul.mubr.bf16.gmra.mrb[0].mxu0 %v330
  %v1316 = vpop.f32.mrb[0].mxu0
  %v1317 = vadd.f32 %v1277, %v1316
  %v1318 = vpop.f32.mrb[0].mxu0
  %v1319 = vpop.f32.mrb[0].mxu0
  %v1320 = vpop.f32.mrb[0].mxu0
  %1321 = vdwg.mxu0
  %1322 = vmatprep.subr.bf16.mxu0 0
  %1323 = vmatpush1.bf16.msra.mxu0 %v946
  %1324 = vmatprep.subr.bf16.mxu0 0
  %1325 = vmatpush1.bf16.msra.mxu0 %v947
  %1326 = vmatprep.subr.bf16.mxu0 0
  %1327 = vmatpush1.bf16.msra.mxu0 %v948
  %1328 = vmatprep.subr.bf16.mxu0 0
  %1329 = vmatpush1.bf16.msra.mxu0 %v949
  %1330 = vmatprep.subr.bf16.mxu0 0
  %1331 = vmatpush1.bf16.msra.mxu0 %v950
  %1332 = vmatprep.subr.bf16.mxu0 0
  %1333 = vmatpush1.bf16.msra.mxu0 %v951
  %1334 = vmatprep.subr.bf16.mxu0 0
  %1335 = vmatpush1.bf16.msra.mxu0 %v952
  %1336 = vmatprep.subr.bf16.mxu0 0
  %1337 = vmatpush1.bf16.msra.mxu0 %v953
  %1338 = vmatprep.subr.bf16.mxu0 0
  %1339 = vmatpush1.bf16.msra.mxu0 %v954
  %1340 = vmatprep.subr.bf16.mxu0 0
  %1341 = vmatpush1.bf16.msra.mxu0 %v955
  %1342 = vmatprep.subr.bf16.mxu0 0
  %1343 = vmatpush1.bf16.msra.mxu0 %v956
  %1344 = vmatprep.subr.bf16.mxu0 0
  %1345 = vmatpush1.bf16.msra.mxu0 %v957
  %1346 = vmatprep.subr.bf16.mxu0 0
  %1347 = vmatpush1.bf16.msra.mxu0 %v958
  %1348 = vmatprep.subr.bf16.mxu0 0
  %1349 = vmatpush1.bf16.msra.mxu0 %v959
  %1350 = vmatprep.subr.bf16.mxu0 0
  %1351 = vmatpush1.bf16.msra.mxu0 %v960
  %1352 = vmatprep.subr.bf16.mxu0 0
  %1353 = vmatpush1.bf16.msra.mxu0 %v961
  %1354 = vmatprep.mubr.bf16.mxu0 %v333
  %1355 = vmatmul.mubr.bf16.gmra.mrb[0].mxu0 %v332
  %v1356 = vpop.f32.mrb[0].mxu0
  %v1357 = vadd.f32 %v1317, %v1356
  %v1358 = vpop.f32.mrb[0].mxu0
  %v1359 = vpop.f32.mrb[0].mxu0
  %v1360 = vpop.f32.mrb[0].mxu0
  %1361 = vdwg.mxu0
  %1362 = vmatprep.subr.bf16.mxu0 0
  %1363 = vmatpush1.bf16.msra.mxu0 %v962
  %1364 = vmatprep.subr.bf16.mxu0 0
  %1365 = vmatpush1.bf16.msra.mxu0 %v963
  %1366 = vmatprep.subr.bf16.mxu0 0
  %1367 = vmatpush1.bf16.msra.mxu0 %v964
  %1368 = vmatprep.subr.bf16.mxu0 0
  %1369 = vmatpush1.bf16.msra.mxu0 %v965
  %1370 = vmatprep.subr.bf16.mxu0 0
  %1371 = vmatpush1.bf16.msra.mxu0 %v966
  %1372 = vmatprep.subr.bf16.mxu0 0
  %1373 = vmatpush1.bf16.msra.mxu0 %v967
  %1374 = vmatprep.subr.bf16.mxu0 0
  %1375 = vmatpush1.bf16.msra.mxu0 %v968
  %1376 = vmatprep.subr.bf16.mxu0 0
  %1377 = vmatpush1.bf16.msra.mxu0 %v969
  %1378 = vmatprep.subr.bf16.mxu0 0
  %1379 = vmatpush1.bf16.msra.mxu0 %v970
  %1380 = vmatprep.subr.bf16.mxu0 0
  %1381 = vmatpush1.bf16.msra.mxu0 %v971
  %1382 = vmatprep.subr.bf16.mxu0 0
  %1383 = vmatpush1.bf16.msra.mxu0 %v972
  %1384 = vmatprep.subr.bf16.mxu0 0
  %1385 = vmatpush1.bf16.msra.mxu0 %v973
  %1386 = vmatprep.subr.bf16.mxu0 0
  %1387 = vmatpush1.bf16.msra.mxu0 %v974
  %1388 = vmatprep.subr.bf16.mxu0 0
  %1389 = vmatpush1.bf16.msra.mxu0 %v975
  %1390 = vmatprep.subr.bf16.mxu0 0
  %1391 = vmatpush1.bf16.msra.mxu0 %v976
  %1392 = vmatprep.subr.bf16.mxu0 0
  %1393 = vmatpush1.bf16.msra.mxu0 %v977
  %1394 = vmatprep.mubr.bf16.mxu0 %v335
  %1395 = vmatmul.mubr.bf16.gmra.mrb[0].mxu0 %v334
  %v1396 = vpop.f32.mrb[0].mxu0
  %v1397 = vadd.f32 %v1357, %v1396
  %v1398 = vpop.f32.mrb[0].mxu0
  %v1399 = vpop.f32.mrb[0].mxu0
  %v1400 = vpop.f32.mrb[0].mxu0
  %1401 = vdwg.mxu0
  %1402 = vmatprep.subr.bf16.mxu0 0
  %1403 = vmatpush1.bf16.msra.mxu0 %v978
  %1404 = vmatprep.subr.bf16.mxu0 0
  %1405 = vmatpush1.bf16.msra.mxu0 %v979
  %1406 = vmatprep.subr.bf16.mxu0 0
  %1407 = vmatpush1.bf16.msra.mxu0 %v980
  %1408 = vmatprep.subr.bf16.mxu0 0
  %1409 = vmatpush1.bf16.msra.mxu0 %v981
  %1410 = vmatprep.subr.bf16.mxu0 0
  %1411 = vmatpush1.bf16.msra.mxu0 %v982
  %1412 = vmatprep.subr.bf16.mxu0 0
  %1413 = vmatpush1.bf16.msra.mxu0 %v983
  %1414 = vmatprep.subr.bf16.mxu0 0
  %1415 = vmatpush1.bf16.msra.mxu0 %v984
  %1416 = vmatprep.subr.bf16.mxu0 0
  %1417 = vmatpush1.bf16.msra.mxu0 %v985
  %1418 = vmatprep.subr.bf16.mxu0 0
  %1419 = vmatpush1.bf16.msra.mxu0 %v986
  %1420 = vmatprep.subr.bf16.mxu0 0
  %1421 = vmatpush1.bf16.msra.mxu0 %v987
  %1422 = vmatprep.subr.bf16.mxu0 0
  %1423 = vmatpush1.bf16.msra.mxu0 %v988
  %1424 = vmatprep.subr.bf16.mxu0 0
  %1425 = vmatpush1.bf16.msra.mxu0 %v989
  %1426 = vmatprep.subr.bf16.mxu0 0
  %1427 = vmatpush1.bf16.msra.mxu0 %v990
  %1428 = vmatprep.subr.bf16.mxu0 0
  %1429 = vmatpush1.bf16.msra.mxu0 %v991
  %1430 = vmatprep.subr.bf16.mxu0 0
  %1431 = vmatpush1.bf16.msra.mxu0 %v992
  %1432 = vmatprep.subr.bf16.mxu0 0
  %1433 = vmatpush1.bf16.msra.mxu0 %v993
  %1434 = vmatprep.mubr.bf16.mxu0 %v337
  %1435 = vmatmul.mubr.bf16.gmra.mrb[0].mxu0 %v336
  %v1436 = vpop.f32.mrb[0].mxu0
  %v1437 = vadd.f32 %v1397, %v1436
  %v1438 = vpop.f32.mrb[0].mxu0
  %v1439 = vpop.f32.mrb[0].mxu0
  %v1440 = vpop.f32.mrb[0].mxu0
  %1441 = vdwg.mxu0
  %v1442 = vmax.f32 %v1437, 0.0
  %v1443 = vpack.c.bf16 %v1442, %v1442
  %v1444 = vld [vmem:[%s3] sm:$0xf]
  %v1445 = vld [vmem:[%s3 + $0x4] sm:$0xf]
  %v1446 = vld [vmem:[%s3 + $0x8] sm:$0xf]
  %v1447 = vld [vmem:[%s3 + $0xc] sm:$0xf]
  %v1448 = vld [vmem:[%s3 + $0x10] sm:$0xf]
  %v1449 = vld [vmem:[%s3 + $0x14] sm:$0xf]
  %v1450 = vld [vmem:[%s3 + $0x18] sm:$0xf]
  %v1451 = vld [vmem:[%s3 + $0x1c] sm:$0xf]
  %v1452 = vld [vmem:[%s3 + $0x20] sm:$0xf]
  %v1453 = vld [vmem:[%s3 + $0x24] sm:$0xf]
  %v1454 = vld [vmem:[%s3 + $0x28] sm:$0xf]
  %v1455 = vld [vmem:[%s3 + $0x2c] sm:$0xf]
  %v1456 = vld [vmem:[%s3 + $0x30] sm:$0xf]
  %v1457 = vld [vmem:[%s3 + $0x34] sm:$0xf]
  %v1458 = vld [vmem:[%s3 + $0x38] sm:$0xf]
  %v1459 = vld [vmem:[%s3 + $0x3c] sm:$0xf]
  %v1460 = vld [vmem:[%s4] sm:$0x1]
  %v1462 = vlaneseq
  %v1463 = vshrl.u32 %v1462, 7
  %v1464 = vsub.s32 0, %v1463
  %v1465 = vrot.slane %v1460, %v1464
  %v1483 = vunpack.c.l.b16 %v1444
  %v1484 = vunpack.c.l.b16 %v1445
  %v1485 = vunpack.c.l.b16 %v1446
  %v1486 = vunpack.c.l.b16 %v1447
  %v1487 = vunpack.c.l.b16 %v1448
  %v1488 = vunpack.c.l.b16 %v1449
  %v1489 = vunpack.c.l.b16 %v1450
  %v1490 = vunpack.c.l.b16 %v1451
  %v1491 = vunpack.c.l.b16 %v1452
  %v1492 = vunpack.c.l.b16 %v1453
  %v1493 = vunpack.c.l.b16 %v1454
  %v1494 = vunpack.c.l.b16 %v1455
  %v1495 = vunpack.c.l.b16 %v1456
  %v1496 = vunpack.c.l.b16 %v1457
  %v1497 = vunpack.c.l.b16 %v1458
  %v1498 = vunpack.c.l.b16 %v1459
  %v1499 = vpack.c.b16 %v1484, %v1483
  %v1500 = vpack.c.b16 %v1486, %v1485
  %v1501 = vpack.c.b16 %v1488, %v1487
  %v1502 = vpack.c.b16 %v1490, %v1489
  %v1503 = vpack.c.b16 %v1492, %v1491
  %v1504 = vpack.c.b16 %v1494, %v1493
  %v1505 = vpack.c.b16 %v1496, %v1495
  %v1506 = vpack.c.b16 %v1498, %v1497
  %1515 = vmatprep.subr.bf16.mxu0 0
  %1516 = vmatpush1.bf16.msra.mxu0 %v1499
  %1517 = vmatprep.subr.bf16.mxu0 0
  %1518 = vmatpush1.bf16.msra.mxu0 %v1500
  %1519 = vmatprep.subr.bf16.mxu0 0
  %1520 = vmatpush1.bf16.msra.mxu0 %v1501
  %1521 = vmatprep.subr.bf16.mxu0 0
  %1522 = vmatpush1.bf16.msra.mxu0 %v1502
  %1523 = vmatprep.subr.bf16.mxu0 0
  %1524 = vmatpush1.bf16.msra.mxu0 %v1503
  %1525 = vmatprep.subr.bf16.mxu0 0
  %1526 = vmatpush1.bf16.msra.mxu0 %v1504
  %1527 = vmatprep.subr.bf16.mxu0 0
  %1528 = vmatpush1.bf16.msra.mxu0 %v1505
  %1529 = vmatprep.subr.bf16.mxu0 0
  %1530 = vmatpush1.bf16.msra.mxu0 %v1506
  %1531 = vmatprep.subr.bf16.mxu0 0
  %1532 = vmatpush1.bf16.msra.mxu0 0
  %1533 = vmatprep.subr.bf16.mxu0 0
  %1534 = vmatpush1.bf16.msra.mxu0 0
  %1535 = vmatprep.subr.bf16.mxu0 0
  %1536 = vmatpush1.bf16.msra.mxu0 0
  %1537 = vmatprep.subr.bf16.mxu0 0
  %1538 = vmatpush1.bf16.msra.mxu0 0
  %1539 = vmatprep.subr.bf16.mxu0 0
  %1540 = vmatpush1.bf16.msra.mxu0 0
  %1541 = vmatprep.subr.bf16.mxu0 0
  %1542 = vmatpush1.bf16.msra.mxu0 0
  %1543 = vmatprep.subr.bf16.mxu0 0
  %1544 = vmatpush1.bf16.msra.mxu0 0
  %1545 = vmatprep.subr.bf16.mxu0 0
  %1546 = vmatpush1.bf16.msra.mxu0 0
  %1547 = vmatprep.mubr.bf16.mxu0 0
  %1548 = vmatmul.mubr.bf16.gmra.mrb[0].mxu0 %v1443
  %v1549 = vpop.f32.mrb[0].mxu0
  %v1550 = vadd.f32 %v1465, %v1549
  %v1551 = vpop.f32.mrb[0].mxu0
  %v1552 = vpop.f32.mrb[0].mxu0
  %v1553 = vpop.f32.mrb[0].mxu0
  %1554 = vdwg.mxu0
  %v1555 = vmax.f32 %v1550, 0.0
  %v1556 = vpack.c.bf16 %v1555, %v1555
  %s1557 = scalar_lea.vmem %s3, 64
  %v1558 = vld [vmem:[%s1557] sm:$0xf]
  %v1559 = vld [vmem:[%s1557 + $0x4] sm:$0xf]
  %v1560 = vld [vmem:[%s1557 + $0x8] sm:$0xf]
  %v1561 = vld [vmem:[%s1557 + $0xc] sm:$0xf]
  %v1562 = vld [vmem:[%s1557 + $0x10] sm:$0xf]
  %v1563 = vld [vmem:[%s1557 + $0x14] sm:$0xf]
  %v1564 = vld [vmem:[%s1557 + $0x18] sm:$0xf]
  %v1565 = vld [vmem:[%s1557 + $0x1c] sm:$0xf]
  %v1566 = vld [vmem:[%s1557 + $0x20] sm:$0xf]
  %v1567 = vld [vmem:[%s1557 + $0x24] sm:$0xf]
  %v1568 = vld [vmem:[%s1557 + $0x28] sm:$0xf]
  %v1569 = vld [vmem:[%s1557 + $0x2c] sm:$0xf]
  %v1570 = vld [vmem:[%s1557 + $0x30] sm:$0xf]
  %v1571 = vld [vmem:[%s1557 + $0x34] sm:$0xf]
  %v1572 = vld [vmem:[%s1557 + $0x38] sm:$0xf]
  %v1573 = vld [vmem:[%s1557 + $0x3c] sm:$0xf]
  %s1574 = scalar_lea.vmem %s4, 1
  %v1575 = vld [vmem:[%s1574] sm:$0x1]
  %v1577 = vlaneseq
  %v1578 = vshrl.u32 %v1577, 7
  %v1579 = vsub.s32 0, %v1578
  %v1580 = vrot.slane %v1575, %v1579
  %v1598 = vunpack.c.l.b16 %v1558
  %v1599 = vunpack.c.l.b16 %v1559
  %v1600 = vunpack.c.l.b16 %v1560
  %v1601 = vunpack.c.l.b16 %v1561
  %v1602 = vunpack.c.l.b16 %v1562
  %v1603 = vunpack.c.l.b16 %v1563
  %v1604 = vunpack.c.l.b16 %v1564
  %v1605 = vunpack.c.l.b16 %v1565
  %v1606 = vunpack.c.l.b16 %v1566
  %v1607 = vunpack.c.l.b16 %v1567
  %v1608 = vunpack.c.l.b16 %v1568
  %v1609 = vunpack.c.l.b16 %v1569
  %v1610 = vunpack.c.l.b16 %v1570
  %v1611 = vunpack.c.l.b16 %v1571
  %v1612 = vunpack.c.l.b16 %v1572
  %v1613 = vunpack.c.l.b16 %v1573
  %v1614 = vpack.c.b16 %v1599, %v1598
  %v1615 = vpack.c.b16 %v1601, %v1600
  %v1616 = vpack.c.b16 %v1603, %v1602
  %v1617 = vpack.c.b16 %v1605, %v1604
  %v1618 = vpack.c.b16 %v1607, %v1606
  %v1619 = vpack.c.b16 %v1609, %v1608
  %v1620 = vpack.c.b16 %v1611, %v1610
  %v1621 = vpack.c.b16 %v1613, %v1612
  %1630 = vmatprep.subr.bf16.mxu0 0
  %1631 = vmatpush1.bf16.msra.mxu0 %v1614
  %1632 = vmatprep.subr.bf16.mxu0 0
  %1633 = vmatpush1.bf16.msra.mxu0 %v1615
  %1634 = vmatprep.subr.bf16.mxu0 0
  %1635 = vmatpush1.bf16.msra.mxu0 %v1616
  %1636 = vmatprep.subr.bf16.mxu0 0
  %1637 = vmatpush1.bf16.msra.mxu0 %v1617
  %1638 = vmatprep.subr.bf16.mxu0 0
  %1639 = vmatpush1.bf16.msra.mxu0 %v1618
  %1640 = vmatprep.subr.bf16.mxu0 0
  %1641 = vmatpush1.bf16.msra.mxu0 %v1619
  %1642 = vmatprep.subr.bf16.mxu0 0
  %1643 = vmatpush1.bf16.msra.mxu0 %v1620
  %1644 = vmatprep.subr.bf16.mxu0 0
  %1645 = vmatpush1.bf16.msra.mxu0 %v1621
  %1646 = vmatprep.subr.bf16.mxu0 0
  %1647 = vmatpush1.bf16.msra.mxu0 0
  %1648 = vmatprep.subr.bf16.mxu0 0
  %1649 = vmatpush1.bf16.msra.mxu0 0
  %1650 = vmatprep.subr.bf16.mxu0 0
  %1651 = vmatpush1.bf16.msra.mxu0 0
  %1652 = vmatprep.subr.bf16.mxu0 0
  %1653 = vmatpush1.bf16.msra.mxu0 0
  %1654 = vmatprep.subr.bf16.mxu0 0
  %1655 = vmatpush1.bf16.msra.mxu0 0
  %1656 = vmatprep.subr.bf16.mxu0 0
  %1657 = vmatpush1.bf16.msra.mxu0 0
  %1658 = vmatprep.subr.bf16.mxu0 0
  %1659 = vmatpush1.bf16.msra.mxu0 0
  %1660 = vmatprep.subr.bf16.mxu0 0
  %1661 = vmatpush1.bf16.msra.mxu0 0
  %1662 = vmatprep.mubr.bf16.mxu0 0
  %1663 = vmatmul.mubr.bf16.gmra.mrb[0].mxu0 %v1556
  %v1664 = vpop.f32.mrb[0].mxu0
  %v1665 = vadd.f32 %v1580, %v1664
  %v1666 = vpop.f32.mrb[0].mxu0
  %v1667 = vpop.f32.mrb[0].mxu0
  %v1668 = vpop.f32.mrb[0].mxu0
  %1669 = vdwg.mxu0
  %v1670 = vmax.f32 %v1665, 0.0
  %v1671 = vpack.c.bf16 %v1670, %v1670
  %v1672 = vld [vmem:[%s5] sm:$0xf]
  %v1673 = vld [vmem:[%s5 + $0x4] sm:$0xf]
  %v1674 = vld [vmem:[%s5 + $0x8] sm:$0xf]
  %v1675 = vld [vmem:[%s5 + $0xc] sm:$0xf]
  %v1676 = vld [vmem:[%s5 + $0x10] sm:$0xf]
  %v1677 = vld [vmem:[%s5 + $0x14] sm:$0xf]
  %v1678 = vld [vmem:[%s5 + $0x18] sm:$0xf]
  %v1679 = vld [vmem:[%s5 + $0x1c] sm:$0xf]
  %v1680 = vld [vmem:[%s5 + $0x20] sm:$0xf]
  %v1681 = vld [vmem:[%s5 + $0x24] sm:$0xf]
  %v1682 = vld [vmem:[%s5 + $0x28] sm:$0xf]
  %v1683 = vld [vmem:[%s5 + $0x2c] sm:$0xf]
  %v1684 = vld [vmem:[%s5 + $0x30] sm:$0xf]
  %v1685 = vld [vmem:[%s5 + $0x34] sm:$0xf]
  %v1686 = vld [vmem:[%s5 + $0x38] sm:$0xf]
  %v1687 = vld [vmem:[%s5 + $0x3c] sm:$0xf]
  %v1688 = vld [vmem:[%s6] sm:$0x1]
  %v1690 = vlaneseq
  %v1691 = vshrl.u32 %v1690, 7
  %v1692 = vsub.s32 0, %v1691
  %v1693 = vrot.slane %v1688, %v1692
  %v1711 = vunpack.c.l.b16 %v1672
  %v1712 = vunpack.c.l.b16 %v1673
  %v1713 = vunpack.c.l.b16 %v1674
  %v1714 = vunpack.c.l.b16 %v1675
  %v1715 = vunpack.c.l.b16 %v1676
  %v1716 = vunpack.c.l.b16 %v1677
  %v1717 = vunpack.c.l.b16 %v1678
  %v1718 = vunpack.c.l.b16 %v1679
  %v1719 = vunpack.c.l.b16 %v1680
  %v1720 = vunpack.c.l.b16 %v1681
  %v1721 = vunpack.c.l.b16 %v1682
  %v1722 = vunpack.c.l.b16 %v1683
  %v1723 = vunpack.c.l.b16 %v1684
  %v1724 = vunpack.c.l.b16 %v1685
  %v1725 = vunpack.c.l.b16 %v1686
  %v1726 = vunpack.c.l.b16 %v1687
  %v1727 = vpack.c.b16 %v1712, %v1711
  %v1728 = vpack.c.b16 %v1714, %v1713
  %v1729 = vpack.c.b16 %v1716, %v1715
  %v1730 = vpack.c.b16 %v1718, %v1717
  %v1731 = vpack.c.b16 %v1720, %v1719
  %v1732 = vpack.c.b16 %v1722, %v1721
  %v1733 = vpack.c.b16 %v1724, %v1723
  %v1734 = vpack.c.b16 %v1726, %v1725
  %1743 = vmatprep.subr.bf16.mxu0 0
  %1744 = vmatpush1.bf16.msra.mxu0 %v1727
  %1745 = vmatprep.subr.bf16.mxu0 0
  %1746 = vmatpush1.bf16.msra.mxu0 %v1728
  %1747 = vmatprep.subr.bf16.mxu0 0
  %1748 = vmatpush1.bf16.msra.mxu0 %v1729
  %1749 = vmatprep.subr.bf16.mxu0 0
  %1750 = vmatpush1.bf16.msra.mxu0 %v1730
  %1751 = vmatprep.subr.bf16.mxu0 0
  %1752 = vmatpush1.bf16.msra.mxu0 %v1731
  %1753 = vmatprep.subr.bf16.mxu0 0
  %1754 = vmatpush1.bf16.msra.mxu0 %v1732
  %1755 = vmatprep.subr.bf16.mxu0 0
  %1756 = vmatpush1.bf16.msra.mxu0 %v1733
  %1757 = vmatprep.subr.bf16.mxu0 0
  %1758 = vmatpush1.bf16.msra.mxu0 %v1734
  %1759 = vmatprep.subr.bf16.mxu0 0
  %1760 = vmatpush1.bf16.msra.mxu0 0
  %1761 = vmatprep.subr.bf16.mxu0 0
  %1762 = vmatpush1.bf16.msra.mxu0 0
  %1763 = vmatprep.subr.bf16.mxu0 0
  %1764 = vmatpush1.bf16.msra.mxu0 0
  %1765 = vmatprep.subr.bf16.mxu0 0
  %1766 = vmatpush1.bf16.msra.mxu0 0
  %1767 = vmatprep.subr.bf16.mxu0 0
  %1768 = vmatpush1.bf16.msra.mxu0 0
  %1769 = vmatprep.subr.bf16.mxu0 0
  %1770 = vmatpush1.bf16.msra.mxu0 0
  %1771 = vmatprep.subr.bf16.mxu0 0
  %1772 = vmatpush1.bf16.msra.mxu0 0
  %1773 = vmatprep.subr.bf16.mxu0 0
  %1774 = vmatpush1.bf16.msra.mxu0 0
  %1775 = vmatprep.mubr.bf16.mxu0 0
  %1776 = vmatmul.mubr.bf16.gmra.mrb[0].mxu0 %v1671
  %v1777 = vpop.f32.mrb[0].mxu0
  %v1778 = vadd.f32 %v1693, %v1777
  %v1779 = vpop.f32.mrb[0].mxu0
  %v1780 = vpop.f32.mrb[0].mxu0
  %v1781 = vpop.f32.mrb[0].mxu0
  %1782 = vdwg.mxu0
  %1783 = vst [vmem:[%s7] sm:$0xff] %v1778
  // Predicated region
  $region30: #{dqn_forward.5} parent=0 // pred_check
    _
  $region31: #{dqn_forward.5} parent=0 // pred_check_branch
    %1785 = sbr.rel (0) target = $region33
  $region32: #{dqn_forward.5} parent=0 // pred_region
    _
  $region33: #{dqn_forward.5} parent=0 // pred_fallthru
    _
  // Predicated region
  $region34: #{dqn_forward.5} parent=0 // pred_check
    _
  $region35: #{dqn_forward.5} parent=0 // pred_check_branch
    %1787 = sbr.rel (0) target = $region37
  $region36: #{dqn_forward.5} parent=0 // pred_region
    _
  $region37: #{dqn_forward.5} parent=0 // pred_fallthru
    _

</llo_original>
